<compile_context>
chip_gen: v7x
topology: tpu7x:2x2x1
jax: 0.10.0
libtpu: 0.0.40
codegen_flags: <defaults>
</compile_context>

<pallas_src>
import functools

import jax
import jax.numpy as jnp
from jax import lax
from jax.experimental import pallas as pl
from jax.experimental.pallas import tpu as pltpu

_WEIGHTS = (1.0, 0.5, 0.25, 0.125, 0.125)


def _pool_cols_matrix(cols):
    """(cols, cols//2) f32 matrix with 0.25 at rows (2j, 2j+1) of column j."""
    half = cols // 2
    r = jnp.arange(cols, dtype=jnp.int32)[:, None]
    c = jnp.arange(half, dtype=jnp.int32)[None, :]
    return jnp.where((r // 2) == c, jnp.float32(0.25), jnp.float32(0.0))


def _ms_l1_kernel(x_ref, y_ref, *rest, n_scales, stage_diff):
    """Fused multiscale L1 on one (TB*H, W) block.

    rest layout: pool-matrix refs (n_scales-1), out_ref (SMEM (1, n_scales)),
    then scratch refs ([full f32 diff if stage_diff] + pooled diff buffers).
    """
    n_pool = n_scales - 1
    pw_refs = rest[:n_pool]
    out_ref = rest[n_pool]
    scratch = rest[n_pool + 1:]

    if n_scales == 1:
        d = x_ref[...].astype(jnp.float32) - y_ref[...].astype(jnp.float32)
        out_ref[0, 0] = jnp.sum(jnp.abs(d))
        return

    if stage_diff:
        d0_ref = scratch[0]
        dbufs = scratch[1:]
    else:
        dbufs = scratch

    # ---------------- scale 0: read inputs, diff, L1, pool -----------------
    if stage_diff:
        # One contiguous load + cast, then cheap f32 sublane strides (avoids
        # packed-dtype stride-2 sublane shuffles for bf16/fp8 inputs).
        d0_ref[...] = (x_ref[...].astype(jnp.float32)
                       - y_ref[...].astype(jnp.float32))
        half = d0_ref.shape[0] // 2
        d_e = d0_ref[pl.ds(0, half, stride=2), :]
        d_o = d0_ref[pl.ds(1, half, stride=2), :]
    else:
        half = x_ref.shape[0] // 2
        d_e = (x_ref[pl.ds(0, half, stride=2), :].astype(jnp.float32)
               - y_ref[pl.ds(0, half, stride=2), :].astype(jnp.float32))
        d_o = (x_ref[pl.ds(1, half, stride=2), :].astype(jnp.float32)
               - y_ref[pl.ds(1, half, stride=2), :].astype(jnp.float32))

    out_ref[0, 0] = jnp.sum(jnp.abs(d_e) + jnp.abs(d_o))
    # 2x2 avg pool of the DIFF (pooling is linear): row pairs via VPU add,
    # column pairs via a tiny 0.25 selection matmul (MXU slack -> HIGHEST free).
    dbufs[0][...] = jnp.dot(d_e + d_o, pw_refs[0][...],
                            precision=lax.Precision.HIGHEST,
                            preferred_element_type=jnp.float32)

    # ---------------- scales 1 .. n-2: L1 on pooled diff, pool again -------
    for s in range(1, n_scales - 1):
        cur = dbufs[s - 1]
        half = cur.shape[0] // 2
        d_e = cur[pl.ds(0, half, stride=2), :]
        d_o = cur[pl.ds(1, half, stride=2), :]
        out_ref[0, s] = jnp.sum(jnp.abs(d_e) + jnp.abs(d_o))
        dbufs[s][...] = jnp.dot(d_e + d_o, pw_refs[s][...],
                                precision=lax.Precision.HIGHEST,
                                preferred_element_type=jnp.float32)

    # ---------------- last scale: plain L1 sum, no pooling -----------------
    out_ref[0, n_scales - 1] = jnp.sum(jnp.abs(dbufs[n_scales - 2][...]))


def _vmem_budget_bytes():
    """(per-block VMEM budget, vmem_limit_bytes) derived from the chip."""
    cap = None
    try:
        cap = getattr(pltpu.get_tpu_info(), "vmem_capacity_bytes", None)
    except Exception:
        cap = None
    if not cap:
        cap = 64 << 20                       # assume smallest (v7x) if unknown
    if cap <= (64 << 20):                    # v7x-class: 64 MiB physical
        return 24 << 20, 44 << 20
    return 48 << 20, 80 << 20                # v5e / v6e: 128 MiB physical


def _choose_block_images(b, h, w, itemsize, n_scales, stage_diff, budget):
    """Images per block: fits `budget`, divides b, keeps every scale's rows
    sublane-aligned, and prefers >= 2 blocks (dual-TC / pipeline ramp)."""
    per_image = 2 * 2 * h * w * itemsize     # x+y tiles, double-buffered
    if stage_diff:
        per_image += h * w * 4               # staged full-res f32 diff
    per_image += (h * w * 4) // 2            # pooled diff buffers (bound)
    cap = int(max(1, min(b, budget // max(per_image, 1))))
    align = 8 * (1 << (n_scales - 1))        # keeps all scales (8,*)-aligned
    cands = [t for t in range(cap, 0, -1) if b % t == 0]
    for t in cands:                          # aligned everywhere AND >= 2 blocks
        if t <= b // 2 and (t * h) % align == 0:
            return t
    for t in cands:                          # aligned everywhere
        if (t * h) % align == 0:
            return t
    for t in cands:                          # sublane-aligned, >= 2 blocks
        if t <= b // 2 and (t * h) % 8 == 0:
            return t
    for t in cands:                          # sublane-aligned
        if (t * h) % 8 == 0:
            return t
    return cands[0] if cands else b


@functools.partial(jax.jit, static_argnames=("scale",))
def multiscale_l1_loss(inp, tgt, scale=5):
    """Pallas TPU implementation of MultiscaleL1Loss.forward (mask=None path)."""
    # TODO(synk): the optional `mask` branch (loss on input*mask vs target*mask
    # with the mask downsampled alongside) is not implemented; default mask=None.
    weights = _WEIGHTS[:scale]
    n_scales = len(weights)
    n, c, h, w = inp.shape
    b = n * c

    if n_scales > 1:
        if h // (2 ** (n_scales - 1)) < 1 or w // (2 ** (n_scales - 1)) < 1:
            raise ValueError("spatial dims too small for requested scale")
        if h % (2 ** (n_scales - 1)) != 0:
            # TODO(synk): odd intermediate heights (AvgPool2d row truncation)
            # are not supported by the flattened fused kernel.
            raise NotImplementedError("H must be divisible by 2**(scale-1)")

    # Flatten to a lane-dense 2-D layout (B*H, W); free reshape, native dtype.
    # TODO(synk): for W far below 128, lane-packing several images per vreg row
    # (block-diagonal pool matrix) would recover the unused lanes.
    x2 = inp.reshape(b * h, w)
    y2 = tgt.reshape(b * h, w)

    stage_diff = (x2.dtype.itemsize < 4) and (n_scales > 1)
    budget, vmem_limit = _vmem_budget_bytes()
    tb = _choose_block_images(b, h, w, x2.dtype.itemsize, n_scales,
                              stage_diff, budget)
    num_blocks = b // tb
    rows0 = tb * h

    # Pool matrices (built once, fed as constant-index inputs) + scratch shapes.
    pw_mats, dbuf_shapes = [], []
    r, cc = rows0, w
    for _ in range(n_scales - 1):
        pw_mats.append(_pool_cols_matrix(cc))
        r, cc = r // 2, cc // 2
        dbuf_shapes.append((r, cc))

    scratch = []
    if stage_diff:
        scratch.append(pltpu.VMEM((rows0, w), jnp.float32))
    scratch += [pltpu.VMEM(s, jnp.float32) for s in dbuf_shapes]

    in_specs = [pl.BlockSpec((rows0, w), lambda i: (i, 0)),
                pl.BlockSpec((rows0, w), lambda i: (i, 0))]
    in_specs += [pl.BlockSpec(m.shape, lambda i: (0, 0)) for m in pw_mats]

    kernel = functools.partial(_ms_l1_kernel, n_scales=n_scales,
                               stage_diff=stage_diff)

    part = pl.pallas_call(
        kernel,
        grid=(num_blocks,),
        in_specs=in_specs,
        out_specs=pl.BlockSpec((1, n_scales), lambda i: (i, 0),
                               memory_space=pltpu.MemorySpace.SMEM),
        out_shape=jax.ShapeDtypeStruct((num_blocks, n_scales), jnp.float32),
        scratch_shapes=scratch,
        compiler_params=pltpu.CompilerParams(
            dimension_semantics=("parallel",),
            vmem_limit_bytes=vmem_limit),
    )(x2, y2, *pw_mats)

    sums = jnp.sum(part, axis=0)                                  # (n_scales,)
    nelems = jnp.array(
        [b * (h // 2 ** s) * (w // 2 ** s) for s in range(n_scales)],
        jnp.float32)
    wts = jnp.array(weights, jnp.float32)
    return jnp.sum(wts * sums / nelems)


# -------- pure-JAX reference (mirrors the PyTorch module) --------
def _avg_pool2(x):  # x: (N, C, H, W), even H/W
    nn_, cc_, hh, ww = x.shape
    return x.reshape(nn_, cc_, hh // 2, 2, ww // 2, 2).mean(axis=(3, 5))


def reference_loss(inp, tgt, scale=5):
    weights = _WEIGHTS[:scale]
    x, y = inp, tgt
    loss = 0.0
    for i, wt in enumerate(weights):
        loss = loss + wt * jnp.mean(jnp.abs(x - y))
        if i != len(weights) - 1:
            x = _avg_pool2(x)
            y = _avg_pool2(y)
    return loss


if __name__ == "__main__":
    key = jax.random.PRNGKey(0)
    k1, k2 = jax.random.split(key)
    inp = jax.random.normal(k1, (2, 4, 16, 16), jnp.float32)
    tgt = jax.random.normal(k2, (2, 4, 16, 16), jnp.float32)

    out = multiscale_l1_loss(inp, tgt, scale=5)
    jax.block_until_ready(out)

    ref = reference_loss(inp, tgt, scale=5)
    # HIGHEST-precision pool matmul + f32 accumulation -> tight tolerance again.
    assert jnp.allclose(out, ref, rtol=1e-5, atol=1e-6), (out, ref)
    print("KERNEL_OK")
</pallas_src>

<mosaic_0001>
module attributes {stable_mosaic.version = 11 : i64} {
  func.func @_ms_l1_kernel(%arg0: i32, %arg1: memref<128x16xf32, #tpu.memory_space<vmem>>, %arg2: memref<128x16xf32, #tpu.memory_space<vmem>>, %arg3: memref<16x8xf32, #tpu.memory_space<vmem>>, %arg4: memref<8x4xf32, #tpu.memory_space<vmem>>, %arg5: memref<4x2xf32, #tpu.memory_space<vmem>>, %arg6: memref<2x1xf32, #tpu.memory_space<vmem>>, %arg7: memref<1x5xf32, #tpu.memory_space<smem>>, %arg8: memref<64x8xf32, #tpu.memory_space<vmem>>, %arg9: memref<32x4xf32, #tpu.memory_space<vmem>>, %arg10: memref<16x2xf32, #tpu.memory_space<vmem>>, %arg11: memref<8x1xf32, #tpu.memory_space<vmem>>) attributes {dimension_semantics = [#tpu.dimension_semantics<parallel>], iteration_bounds = array<i64: 1>, scalar_prefetch = 0 : i64, scratch_operands = 4 : i64, tpu.core_type = #tpu.core_type<tc>, window_params = [{transform_indices = @transform_0, window_bounds = array<i64: 128, 16>}, {transform_indices = @transform_1, window_bounds = array<i64: 128, 16>}, {pipeline_mode = #tpu.pipeline_mode<synchronous>, transform_indices = @transform_2, window_bounds = array<i64: 16, 8>}, {pipeline_mode = #tpu.pipeline_mode<synchronous>, transform_indices = @transform_3, window_bounds = array<i64: 8, 4>}, {pipeline_mode = #tpu.pipeline_mode<synchronous>, transform_indices = @transform_4, window_bounds = array<i64: 4, 2>}, {pipeline_mode = #tpu.pipeline_mode<synchronous>, transform_indices = @transform_5, window_bounds = array<i64: 2, 1>}, {transform_indices = @transform_6, window_bounds = array<i64: 1, 5>}]} {
    %c0 = arith.constant 0 : index
    %c0_0 = arith.constant 0 : index
    %0 = tpu.strided_load %arg1[%c0, %c0_0] {strides = array<i32: 2, 1>} : memref<128x16xf32, #tpu.memory_space<vmem>>, vector<64x16xf32>
    %c0_1 = arith.constant 0 : index
    %c0_2 = arith.constant 0 : index
    %1 = tpu.strided_load %arg2[%c0_1, %c0_2] {strides = array<i32: 2, 1>} : memref<128x16xf32, #tpu.memory_space<vmem>>, vector<64x16xf32>
    %2 = arith.subf %0, %1 : vector<64x16xf32>
    %c1 = arith.constant 1 : index
    %c0_3 = arith.constant 0 : index
    %3 = tpu.strided_load %arg1[%c1, %c0_3] {strides = array<i32: 2, 1>} : memref<128x16xf32, #tpu.memory_space<vmem>>, vector<64x16xf32>
    %c1_4 = arith.constant 1 : index
    %c0_5 = arith.constant 0 : index
    %4 = tpu.strided_load %arg2[%c1_4, %c0_5] {strides = array<i32: 2, 1>} : memref<128x16xf32, #tpu.memory_space<vmem>>, vector<64x16xf32>
    %5 = arith.subf %3, %4 : vector<64x16xf32>
    %6 = math.absf %2 : vector<64x16xf32>
    %7 = math.absf %5 : vector<64x16xf32>
    %8 = arith.addf %6, %7 : vector<64x16xf32>
    %9 = vector.shape_cast %8 : vector<64x16xf32> to vector<1x64x16xf32>
    %cst = arith.constant dense<0.000000e+00> : vector<1xf32>
    %10 = vector.multi_reduction <add>, %9, %cst [1, 2] : vector<1x64x16xf32> to vector<1xf32>
    %11 = vector.shape_cast %10 : vector<1xf32> to vector<1x1x1xf32>
    %12 = vector.extract %11[0, 0, 0] : f32 from vector<1x1x1xf32>
    %c0_6 = arith.constant 0 : index
    %c0_7 = arith.constant 0 : index
    %13 = memref.load %arg7[%c0_6, %c0_7] : memref<1x5xf32, #tpu.memory_space<smem>>
    memref.store %12, %arg7[%c0_6, %c0_7] : memref<1x5xf32, #tpu.memory_space<smem>>
    %14 = arith.addf %2, %5 : vector<64x16xf32>
    %c0_8 = arith.constant 0 : index
    %c0_9 = arith.constant 0 : index
    %15 = vector.load %arg3[%c0_8, %c0_9] : memref<16x8xf32, #tpu.memory_space<vmem>>, vector<16x8xf32>
    %cst_10 = arith.constant dense<0.000000e+00> : vector<64x8xf32>
    %16 = tpu.matmul %14, %15, %cst_10 {dimension_numbers = #tpu.dot_dimension_numbers<[1], [0], [0], [1], [0, 0, 1, 1], [], []>, precision = #tpu.contract_precision<fp32>} : vector<64x16xf32>, vector<16x8xf32>, vector<64x8xf32> -> vector<64x8xf32>
    %c0_11 = arith.constant 0 : index
    %c0_12 = arith.constant 0 : index
    %17 = vector.load %arg8[%c0_11, %c0_12] : memref<64x8xf32, #tpu.memory_space<vmem>>, vector<64x8xf32>
    tpu.vector_store %arg8[%c0_11, %c0_12], %16 {strides = array<i32>} : memref<64x8xf32, #tpu.memory_space<vmem>>, vector<64x8xf32>,
    %c0_13 = arith.constant 0 : index
    %c0_14 = arith.constant 0 : index
    %18 = tpu.strided_load %arg8[%c0_13, %c0_14] {strides = array<i32: 2, 1>} : memref<64x8xf32, #tpu.memory_space<vmem>>, vector<32x8xf32>
    %c1_15 = arith.constant 1 : index
    %c0_16 = arith.constant 0 : index
    %19 = tpu.strided_load %arg8[%c1_15, %c0_16] {strides = array<i32: 2, 1>} : memref<64x8xf32, #tpu.memory_space<vmem>>, vector<32x8xf32>
    %20 = math.absf %18 : vector<32x8xf32>
    %21 = math.absf %19 : vector<32x8xf32>
    %22 = arith.addf %20, %21 : vector<32x8xf32>
    %23 = vector.shape_cast %22 : vector<32x8xf32> to vector<1x32x8xf32>
    %cst_17 = arith.constant dense<0.000000e+00> : vector<1xf32>
    %24 = vector.multi_reduction <add>, %23, %cst_17 [1, 2] : vector<1x32x8xf32> to vector<1xf32>
    %25 = vector.shape_cast %24 : vector<1xf32> to vector<1x1x1xf32>
    %26 = vector.extract %25[0, 0, 0] : f32 from vector<1x1x1xf32>
    %c0_18 = arith.constant 0 : index
    %c1_19 = arith.constant 1 : index
    %27 = memref.load %arg7[%c0_18, %c1_19] : memref<1x5xf32, #tpu.memory_space<smem>>
    memref.store %26, %arg7[%c0_18, %c1_19] : memref<1x5xf32, #tpu.memory_space<smem>>
    %28 = arith.addf %18, %19 : vector<32x8xf32>
    %c0_20 = arith.constant 0 : index
    %c0_21 = arith.constant 0 : index
    %29 = vector.load %arg4[%c0_20, %c0_21] : memref<8x4xf32, #tpu.memory_space<vmem>>, vector<8x4xf32>
    %cst_22 = arith.constant dense<0.000000e+00> : vector<32x4xf32>
    %30 = tpu.matmul %28, %29, %cst_22 {dimension_numbers = #tpu.dot_dimension_numbers<[1], [0], [0], [1], [0, 0, 1, 1], [], []>, precision = #tpu.contract_precision<fp32>} : vector<32x8xf32>, vector<8x4xf32>, vector<32x4xf32> -> vector<32x4xf32>
    %c0_23 = arith.constant 0 : index
    %c0_24 = arith.constant 0 : index
    %31 = vector.load %arg9[%c0_23, %c0_24] : memref<32x4xf32, #tpu.memory_space<vmem>>, vector<32x4xf32>
    tpu.vector_store %arg9[%c0_23, %c0_24], %30 {strides = array<i32>} : memref<32x4xf32, #tpu.memory_space<vmem>>, vector<32x4xf32>,
    %c0_25 = arith.constant 0 : index
    %c0_26 = arith.constant 0 : index
    %32 = tpu.strided_load %arg9[%c0_25, %c0_26] {strides = array<i32: 2, 1>} : memref<32x4xf32, #tpu.memory_space<vmem>>, vector<16x4xf32>
    %c1_27 = arith.constant 1 : index
    %c0_28 = arith.constant 0 : index
    %33 = tpu.strided_load %arg9[%c1_27, %c0_28] {strides = array<i32: 2, 1>} : memref<32x4xf32, #tpu.memory_space<vmem>>, vector<16x4xf32>
    %34 = math.absf %32 : vector<16x4xf32>
    %35 = math.absf %33 : vector<16x4xf32>
    %36 = arith.addf %34, %35 : vector<16x4xf32>
    %37 = vector.shape_cast %36 : vector<16x4xf32> to vector<1x16x4xf32>
    %cst_29 = arith.constant dense<0.000000e+00> : vector<1xf32>
    %38 = vector.multi_reduction <add>, %37, %cst_29 [1, 2] : vector<1x16x4xf32> to vector<1xf32>
    %39 = vector.shape_cast %38 : vector<1xf32> to vector<1x1x1xf32>
    %40 = vector.extract %39[0, 0, 0] : f32 from vector<1x1x1xf32>
    %c0_30 = arith.constant 0 : index
    %c2 = arith.constant 2 : index
    %41 = memref.load %arg7[%c0_30, %c2] : memref<1x5xf32, #tpu.memory_space<smem>>
    memref.store %40, %arg7[%c0_30, %c2] : memref<1x5xf32, #tpu.memory_space<smem>>
    %42 = arith.addf %32, %33 : vector<16x4xf32>
    %c0_31 = arith.constant 0 : index
    %c0_32 = arith.constant 0 : index
    %43 = vector.load %arg5[%c0_31, %c0_32] : memref<4x2xf32, #tpu.memory_space<vmem>>, vector<4x2xf32>
    %cst_33 = arith.constant dense<0.000000e+00> : vector<16x2xf32>
    %44 = tpu.matmul %42, %43, %cst_33 {dimension_numbers = #tpu.dot_dimension_numbers<[1], [0], [0], [1], [0, 0, 1, 1], [], []>, precision = #tpu.contract_precision<fp32>} : vector<16x4xf32>, vector<4x2xf32>, vector<16x2xf32> -> vector<16x2xf32>
    %c0_34 = arith.constant 0 : index
    %c0_35 = arith.constant 0 : index
    %45 = vector.load %arg10[%c0_34, %c0_35] : memref<16x2xf32, #tpu.memory_space<vmem>>, vector<16x2xf32>
    tpu.vector_store %arg10[%c0_34, %c0_35], %44 {strides = array<i32>} : memref<16x2xf32, #tpu.memory_space<vmem>>, vector<16x2xf32>,
    %c0_36 = arith.constant 0 : index
    %c0_37 = arith.constant 0 : index
    %46 = tpu.strided_load %arg10[%c0_36, %c0_37] {strides = array<i32: 2, 1>} : memref<16x2xf32, #tpu.memory_space<vmem>>, vector<8x2xf32>
    %c1_38 = arith.constant 1 : index
    %c0_39 = arith.constant 0 : index
    %47 = tpu.strided_load %arg10[%c1_38, %c0_39] {strides = array<i32: 2, 1>} : memref<16x2xf32, #tpu.memory_space<vmem>>, vector<8x2xf32>
    %48 = math.absf %46 : vector<8x2xf32>
    %49 = math.absf %47 : vector<8x2xf32>
    %50 = arith.addf %48, %49 : vector<8x2xf32>
    %51 = vector.shape_cast %50 : vector<8x2xf32> to vector<1x8x2xf32>
    %cst_40 = arith.constant dense<0.000000e+00> : vector<1xf32>
    %52 = vector.multi_reduction <add>, %51, %cst_40 [1, 2] : vector<1x8x2xf32> to vector<1xf32>
    %53 = vector.shape_cast %52 : vector<1xf32> to vector<1x1x1xf32>
    %54 = vector.extract %53[0, 0, 0] : f32 from vector<1x1x1xf32>
    %c0_41 = arith.constant 0 : index
    %c3 = arith.constant 3 : index
    %55 = memref.load %arg7[%c0_41, %c3] : memref<1x5xf32, #tpu.memory_space<smem>>
    memref.store %54, %arg7[%c0_41, %c3] : memref<1x5xf32, #tpu.memory_space<smem>>
    %56 = arith.addf %46, %47 : vector<8x2xf32>
    %c0_42 = arith.constant 0 : index
    %c0_43 = arith.constant 0 : index
    %57 = vector.load %arg6[%c0_42, %c0_43] : memref<2x1xf32, #tpu.memory_space<vmem>>, vector<2x1xf32>
    %cst_44 = arith.constant dense<0.000000e+00> : vector<8x1xf32>
    %58 = tpu.matmul %56, %57, %cst_44 {dimension_numbers = #tpu.dot_dimension_numbers<[1], [0], [0], [1], [0, 0, 1, 1], [], []>, precision = #tpu.contract_precision<fp32>} : vector<8x2xf32>, vector<2x1xf32>, vector<8x1xf32> -> vector<8x1xf32>
    %c0_45 = arith.constant 0 : index
    %c0_46 = arith.constant 0 : index
    %59 = vector.load %arg11[%c0_45, %c0_46] : memref<8x1xf32, #tpu.memory_space<vmem>>, vector<8x1xf32>
    tpu.vector_store %arg11[%c0_45, %c0_46], %58 {strides = array<i32>} : memref<8x1xf32, #tpu.memory_space<vmem>>, vector<8x1xf32>,
    %c0_47 = arith.constant 0 : index
    %c0_48 = arith.constant 0 : index
    %60 = vector.load %arg11[%c0_47, %c0_48] : memref<8x1xf32, #tpu.memory_space<vmem>>, vector<8x1xf32>
    %61 = math.absf %60 : vector<8x1xf32>
    %62 = vector.shape_cast %61 : vector<8x1xf32> to vector<1x8x1xf32>
    %cst_49 = arith.constant dense<0.000000e+00> : vector<1xf32>
    %63 = vector.multi_reduction <add>, %62, %cst_49 [1, 2] : vector<1x8x1xf32> to vector<1xf32>
    %64 = vector.shape_cast %63 : vector<1xf32> to vector<1x1x1xf32>
    %65 = vector.extract %64[0, 0, 0] : f32 from vector<1x1x1xf32>
    %c0_50 = arith.constant 0 : index
    %c4 = arith.constant 4 : index
    %66 = memref.load %arg7[%c0_50, %c4] : memref<1x5xf32, #tpu.memory_space<smem>>
    memref.store %65, %arg7[%c0_50, %c4] : memref<1x5xf32, #tpu.memory_space<smem>>
    return
  }
  func.func @transform_0(%arg0: i32) -> (i32, i32) {
    %c0_i32 = arith.constant 0 : i32
    %c0_i32_0 = arith.constant 0 : i32
    return %arg0, %c0_i32 : i32, i32
  }
  func.func @transform_1(%arg0: i32) -> (i32, i32) {
    %c0_i32 = arith.constant 0 : i32
    %c0_i32_0 = arith.constant 0 : i32
    return %arg0, %c0_i32 : i32, i32
  }
  func.func @transform_2(%arg0: i32) -> (i32, i32) {
    %c0_i32 = arith.constant 0 : i32
    %c0_i32_0 = arith.constant 0 : i32
    %c0_i32_1 = arith.constant 0 : i32
    return %c0_i32, %c0_i32_0 : i32, i32
  }
  func.func @transform_3(%arg0: i32) -> (i32, i32) {
    %c0_i32 = arith.constant 0 : i32
    %c0_i32_0 = arith.constant 0 : i32
    %c0_i32_1 = arith.constant 0 : i32
    return %c0_i32, %c0_i32_0 : i32, i32
  }
  func.func @transform_4(%arg0: i32) -> (i32, i32) {
    %c0_i32 = arith.constant 0 : i32
    %c0_i32_0 = arith.constant 0 : i32
    %c0_i32_1 = arith.constant 0 : i32
    return %c0_i32, %c0_i32_0 : i32, i32
  }
  func.func @transform_5(%arg0: i32) -> (i32, i32) {
    %c0_i32 = arith.constant 0 : i32
    %c0_i32_0 = arith.constant 0 : i32
    %c0_i32_1 = arith.constant 0 : i32
    return %c0_i32, %c0_i32_0 : i32, i32
  }
  func.func @transform_6(%arg0: i32) -> (i32, i32) {
    %c0_i32 = arith.constant 0 : i32
    %c0_i32_0 = arith.constant 0 : i32
    return %arg0, %c0_i32 : i32, i32
  }
}

</mosaic_0001>

<llo_original>
// kernel: multiscale_l1_loss.1
$region0: #{multiscale_l1_loss.1}
  #allocation0 [shape = 'u32[]', space=smem, size = 0x4, offset = 0x4, fixed_abs, tag = 'smem constant byte address 0x4 - core index']
  #allocation1 [shape = 'u32[144,128]{1,0:T(1,128)}', space=vmem, size = 0x12000, scoped, tag = 'internal scratch']
  #allocation2 [shape = 'f32[64,8]{1,0:T(8,128)}', space=vmem, size = 0x8000, scoped, tag = 'scratch operand']
  #allocation3 [shape = 'f32[32,4]{1,0:T(8,128)}', space=vmem, size = 0x4000, scoped, tag = 'scratch operand']
  #allocation4 [shape = 'f32[16,2]{1,0:T(8,128)}', space=vmem, size = 0x2000, scoped, tag = 'scratch operand']
  #allocation5 [shape = 'f32[8,1]{1,0:T(8,128)}', space=vmem, size = 0x1000, scoped, tag = 'scratch operand']
  %s0 = inlined_call_operand.hbm [shape: f32[128,16], index: 0, kind: input, shape index: {}]
  %s1 = inlined_call_operand.hbm [shape: f32[128,16], index: 1, kind: input, shape index: {}]
  %s2 = inlined_call_operand.vmem [shape: f32[16,8], index: 2, kind: input, shape index: {}]
  %s3 = inlined_call_operand.vmem [shape: f32[8,4], index: 3, kind: input, shape index: {}]
  %s4 = inlined_call_operand.vmem [shape: f32[4,2], index: 4, kind: input, shape index: {}]
  %s5 = inlined_call_operand.vmem [shape: f32[2,1], index: 5, kind: input, shape index: {}]
  %s6 = inlined_call_operand.vmem [shape: f32[1,5], index: 6, kind: output, shape index: {}]
  %s7 = sld [smem:[#allocation0]]
  $region42: #{multiscale_l1_loss.1} parent=0
    _
  %s9 = ssub.s32 1, %s7
  %s10 = scalar_select 0, %s9, %s7
  $region1: #{multiscale_l1_loss.1} parent=0
    #allocation6 [shape = 'u8[65536]{0}', space=vmem, size = 0x10000, scoped, tag = 'input window, operand 0, single buffered']
    #allocation7 [shape = 's32[1]{0}', space=sflag, size = 0x4, scoped, tag = 'scoped memory for multiscale_l1_loss.1']
    #allocation8 [shape = 's32[1]{0}', space=sflag, size = 0x4, scoped, tag = 'scoped memory for multiscale_l1_loss.1']
    #allocation9 [shape = 'u8[65536]{0}', space=vmem, size = 0x10000, scoped, tag = 'input window, operand 1, single buffered']
    #allocation10 [shape = 's32[1]{0}', space=sflag, size = 0x4, scoped, tag = 'scoped memory for multiscale_l1_loss.1']
    #allocation11 [shape = 'u8[512]{0}', space=smem, size = 0x200, scoped, tag = 'output window, operand 0, single buffered']
    %11 = vsyncpa [#allocation7], 0
    %12 = vsyncpa [#allocation10], 0
    %13 = vsyncpa [#allocation8], 0
    // Predicated region
    $region2: #{multiscale_l1_loss.1} parent=1 // pred_check
      _
    $region3: #{multiscale_l1_loss.1} parent=1 // pred_check_branch
      %15 = sbr.rel (0) target = $region5
    $region4: #{multiscale_l1_loss.1} parent=1 // pred_region
      %s17 = ssub.s32 2048, 2048
      %18 = vsyncadd [#allocation7], %s17
      %s19 = sshll.u32 [#allocation6], 4
      %s20 = int_to_ptr.vmem [resolvable:$true] %s19
      %25 = dma.hbm_to_vmem [thread:$0]  %s0, 2048, %s20, [#allocation7], 128, 128, 8
    $region5: #{multiscale_l1_loss.1} parent=1 // pred_fallthru
      _
    // Predicated region
    $region6: #{multiscale_l1_loss.1} parent=1 // pred_check
      _
    $region7: #{multiscale_l1_loss.1} parent=1 // pred_check_branch
      %27 = sbr.rel (0) target = $region9
    $region8: #{multiscale_l1_loss.1} parent=1 // pred_region
      %s29 = ssub.s32 2048, 2048
      %30 = vsyncadd [#allocation10], %s29
      %s31 = sshll.u32 [#allocation9], 4
      %s32 = int_to_ptr.vmem [resolvable:$true] %s31
      %37 = dma.hbm_to_vmem [thread:$0]  %s1, 2048, %s32, [#allocation10], 128, 128, 8
    $region9: #{multiscale_l1_loss.1} parent=1 // pred_fallthru
      _
    // Predicated region
    $region10: #{multiscale_l1_loss.1} parent=1 // pred_check
      _
    $region11: #{multiscale_l1_loss.1} parent=1 // pred_check_branch
      %39 = sbr.rel (0) target = $region13
    $region12: #{multiscale_l1_loss.1} parent=1 // pred_region
      _
    $region13: #{multiscale_l1_loss.1} parent=1 // pred_fallthru
      _
    // Predicated region
    $region14: #{multiscale_l1_loss.1} parent=1 // pred_check
      _
    $region15: #{multiscale_l1_loss.1} parent=1 // pred_check_branch
      %41 = sbr.rel (0) target = $region17
    $region16: #{multiscale_l1_loss.1} parent=1 // pred_region
      _
    $region17: #{multiscale_l1_loss.1} parent=1 // pred_fallthru
      _
    // Predicated region
    $region18: #{multiscale_l1_loss.1} parent=1 // pred_check
      _
    $region19: #{multiscale_l1_loss.1} parent=1 // pred_check_branch
      %43 = sbr.rel (0) target = $region21
    $region20: #{multiscale_l1_loss.1} parent=1 // pred_region
      _
    $region21: #{multiscale_l1_loss.1} parent=1 // pred_fallthru
      _
    // Predicated region
    $region22: #{multiscale_l1_loss.1} parent=1 // pred_check
      _
    $region23: #{multiscale_l1_loss.1} parent=1 // pred_check_branch
      %45 = sbr.rel (0) target = $region25
    $region24: #{multiscale_l1_loss.1} parent=1 // pred_region
      _
    $region25: #{multiscale_l1_loss.1} parent=1 // pred_fallthru
      _
    // Predicated region
    $region26: #{multiscale_l1_loss.1} parent=1 // pred_check
      _
    $region27: #{multiscale_l1_loss.1} parent=1 // pred_check_branch
      %47 = sbr.rel (0) target = $region29
    $region28: #{multiscale_l1_loss.1} parent=1 // pred_region
      %48 = dma.done [#allocation7], 2048
    $region29: #{multiscale_l1_loss.1} parent=1 // pred_fallthru
      _
    // Predicated region
    $region30: #{multiscale_l1_loss.1} parent=1 // pred_check
      _
    $region31: #{multiscale_l1_loss.1} parent=1 // pred_check_branch
      %50 = sbr.rel (0) target = $region33
    $region32: #{multiscale_l1_loss.1} parent=1 // pred_region
      %51 = dma.done [#allocation10], 2048
    $region33: #{multiscale_l1_loss.1} parent=1 // pred_fallthru
      _
    %v52 = vld [vmem:[#allocation6] ss:$2 sm:$0xff]
    %s53 = scalar_lea.vmem [#allocation6], 16
    %v54 = vld [vmem:[%s53] ss:$2 sm:$0xff]
    %s55 = scalar_lea.vmem [#allocation6], 32
    %v56 = vld [vmem:[%s55] ss:$2 sm:$0xff]
    %s57 = scalar_lea.vmem [#allocation6], 48
    %v58 = vld [vmem:[%s57] ss:$2 sm:$0xff]
    %s59 = scalar_lea.vmem [#allocation6], 64
    %v60 = vld [vmem:[%s59] ss:$2 sm:$0xff]
    %s61 = scalar_lea.vmem [#allocation6], 80
    %v62 = vld [vmem:[%s61] ss:$2 sm:$0xff]
    %s63 = scalar_lea.vmem [#allocation6], 96
    %v64 = vld [vmem:[%s63] ss:$2 sm:$0xff]
    %s65 = scalar_lea.vmem [#allocation6], 112
    %v66 = vld [vmem:[%s65] ss:$2 sm:$0xff]
    %v67 = vld [vmem:[#allocation9] ss:$2 sm:$0xff]
    %s68 = scalar_lea.vmem [#allocation9], 16
    %v69 = vld [vmem:[%s68] ss:$2 sm:$0xff]
    %s70 = scalar_lea.vmem [#allocation9], 32
    %v71 = vld [vmem:[%s70] ss:$2 sm:$0xff]
    %s72 = scalar_lea.vmem [#allocation9], 48
    %v73 = vld [vmem:[%s72] ss:$2 sm:$0xff]
    %s74 = scalar_lea.vmem [#allocation9], 64
    %v75 = vld [vmem:[%s74] ss:$2 sm:$0xff]
    %s76 = scalar_lea.vmem [#allocation9], 80
    %v77 = vld [vmem:[%s76] ss:$2 sm:$0xff]
    %s78 = scalar_lea.vmem [#allocation9], 96
    %v79 = vld [vmem:[%s78] ss:$2 sm:$0xff]
    %s80 = scalar_lea.vmem [#allocation9], 112
    %v81 = vld [vmem:[%s80] ss:$2 sm:$0xff]
    %v82 = vsub.f32 %v52, %v67
    %v83 = vsub.f32 %v54, %v69
    %v84 = vsub.f32 %v56, %v71
    %v85 = vsub.f32 %v58, %v73
    %v86 = vsub.f32 %v60, %v75
    %v87 = vsub.f32 %v62, %v77
    %v88 = vsub.f32 %v64, %v79
    %v89 = vsub.f32 %v66, %v81
    %s90 = scalar_lea.vmem [#allocation6], 1
    %v91 = vld [vmem:[%s90] ss:$2 sm:$0xff]
    %s92 = scalar_lea.vmem [#allocation6], 17
    %v93 = vld [vmem:[%s92] ss:$2 sm:$0xff]
    %s94 = scalar_lea.vmem [#allocation6], 33
    %v95 = vld [vmem:[%s94] ss:$2 sm:$0xff]
    %s96 = scalar_lea.vmem [#allocation6], 49
    %v97 = vld [vmem:[%s96] ss:$2 sm:$0xff]
    %s98 = scalar_lea.vmem [#allocation6], 65
    %v99 = vld [vmem:[%s98] ss:$2 sm:$0xff]
    %s100 = scalar_lea.vmem [#allocation6], 81
    %v101 = vld [vmem:[%s100] ss:$2 sm:$0xff]
    %s102 = scalar_lea.vmem [#allocation6], 97
    %v103 = vld [vmem:[%s102] ss:$2 sm:$0xff]
    %s104 = scalar_lea.vmem [#allocation6], 113
    %v105 = vld [vmem:[%s104] ss:$2 sm:$0xff]
    %s106 = scalar_lea.vmem [#allocation9], 1
    %v107 = vld [vmem:[%s106] ss:$2 sm:$0xff]
    %s108 = scalar_lea.vmem [#allocation9], 17
    %v109 = vld [vmem:[%s108] ss:$2 sm:$0xff]
    %s110 = scalar_lea.vmem [#allocation9], 33
    %v111 = vld [vmem:[%s110] ss:$2 sm:$0xff]
    %s112 = scalar_lea.vmem [#allocation9], 49
    %v113 = vld [vmem:[%s112] ss:$2 sm:$0xff]
    %s114 = scalar_lea.vmem [#allocation9], 65
    %v115 = vld [vmem:[%s114] ss:$2 sm:$0xff]
    %s116 = scalar_lea.vmem [#allocation9], 81
    %v117 = vld [vmem:[%s116] ss:$2 sm:$0xff]
    %s118 = scalar_lea.vmem [#allocation9], 97
    %v119 = vld [vmem:[%s118] ss:$2 sm:$0xff]
    %s120 = scalar_lea.vmem [#allocation9], 113
    %v121 = vld [vmem:[%s120] ss:$2 sm:$0xff]
    %v122 = vsub.f32 %v91, %v107
    %v123 = vsub.f32 %v93, %v109
    %v124 = vsub.f32 %v95, %v111
    %v125 = vsub.f32 %v97, %v113
    %v126 = vsub.f32 %v99, %v115
    %v127 = vsub.f32 %v101, %v117
    %v128 = vsub.f32 %v103, %v119
    %v129 = vsub.f32 %v105, %v121
    %v130 = vand.u32 2147483647, %v82
    %v131 = vand.u32 2147483647, %v83
    %v132 = vand.u32 2147483647, %v84
    %v133 = vand.u32 2147483647, %v85
    %v134 = vand.u32 2147483647, %v86
    %v135 = vand.u32 2147483647, %v87
    %v136 = vand.u32 2147483647, %v88
    %v137 = vand.u32 2147483647, %v89
    %v138 = vand.u32 2147483647, %v122
    %v139 = vand.u32 2147483647, %v123
    %v140 = vand.u32 2147483647, %v124
    %v141 = vand.u32 2147483647, %v125
    %v142 = vand.u32 2147483647, %v126
    %v143 = vand.u32 2147483647, %v127
    %v144 = vand.u32 2147483647, %v128
    %v145 = vand.u32 2147483647, %v129
    %v146 = vadd.f32 %v130, %v138
    %v147 = vadd.f32 %v131, %v139
    %v148 = vadd.f32 %v132, %v140
    %v149 = vadd.f32 %v133, %v141
    %v150 = vadd.f32 %v134, %v142
    %v151 = vadd.f32 %v135, %v143
    %v152 = vadd.f32 %v136, %v144
    %v153 = vadd.f32 %v137, %v145
    %vm154 = vcmask 130048
    %v155 = vsel %vm154, %v146, 0.0
    %v156 = vsel %vm154, %v147, 0.0
    %v157 = vadd.f32 %v155, %v156
    %v158 = vsel %vm154, %v148, 0.0
    %v159 = vadd.f32 %v157, %v158
    %v160 = vsel %vm154, %v149, 0.0
    %v161 = vadd.f32 %v159, %v160
    %v162 = vsel %vm154, %v150, 0.0
    %v163 = vadd.f32 %v161, %v162
    %v164 = vsel %vm154, %v151, 0.0
    %v165 = vadd.f32 %v163, %v164
    %v166 = vsel %vm154, %v152, 0.0
    %v167 = vadd.f32 %v165, %v166
    %v168 = vsel %vm154, %v153, 0.0
    %v169 = vadd.f32 %v167, %v168
    %170 = vadd.xlane.f32.xlu0 %v169
    %v171 = vpop.xlane.xlu0 %170
    %v172 = vrot.slane %v171, 4
    %v173 = vadd.f32 %v171, %v172
    %v174 = vrot.slane %v173, 2
    %v175 = vadd.f32 %v173, %v174
    %v176 = vrot.slane %v175, 1
    %v177 = vadd.f32 %v175, %v176
    %s178 = vtos %v177
    %s179 = scalar_lea.smem [#allocation11], 0
    %180 = sst [smem:[%s179]] %s178
    %v181 = vadd.f32 %v82, %v122
    %v182 = vadd.f32 %v83, %v123
    %v183 = vadd.f32 %v84, %v124
    %v184 = vadd.f32 %v85, %v125
    %v185 = vadd.f32 %v86, %v126
    %v186 = vadd.f32 %v87, %v127
    %v187 = vadd.f32 %v88, %v128
    %v188 = vadd.f32 %v89, %v129
    %v189 = vld [vmem:[%s2] sm:$0xff]
    %v190 = vld [vmem:[%s2 + $0x8] sm:$0xff]
    %v192 = vsel %vm154, %v181, 0
    %v195 = vsel %vm154, %v182, 0
    %v198 = vsel %vm154, %v183, 0
    %v201 = vsel %vm154, %v184, 0
    %v204 = vsel %vm154, %v185, 0
    %v207 = vsel %vm154, %v186, 0
    %v210 = vsel %vm154, %v187, 0
    %v213 = vsel %vm154, %v188, 0
    %215 = vmatprep.subr.mxu0 0.0
    %v216 = vand.u32 %v189, 4294901760
    %217 = vmatpush1.msra.mxu0 %v216
    %218 = vmatprep.subr.mxu0 0.0
    %v219 = vand.u32 %v190, 4294901760
    %220 = vmatpush1.msra.mxu0 %v219
    %221 = vmatprep.subr.mxu0 0.0
    %222 = vmatpush1.msra.mxu0 0.0
    %223 = vmatprep.subr.mxu0 0.0
    %224 = vmatpush1.msra.mxu0 0.0
    %225 = vmatprep.subr.mxu0 0.0
    %226 = vmatpush1.msra.mxu0 0.0
    %227 = vmatprep.subr.mxu0 0.0
    %228 = vmatpush1.msra.mxu0 0.0
    %229 = vmatprep.subr.mxu0 0.0
    %230 = vmatpush1.msra.mxu0 0.0
    %231 = vmatprep.subr.mxu0 0.0
    %232 = vmatpush1.msra.mxu0 0.0
    %233 = vmatprep.subr.mxu0 0.0
    %234 = vmatpush1.msra.mxu0 0.0
    %235 = vmatprep.subr.mxu0 0.0
    %236 = vmatpush1.msra.mxu0 0.0
    %237 = vmatprep.subr.mxu0 0.0
    %238 = vmatpush1.msra.mxu0 0.0
    %239 = vmatprep.subr.mxu0 0.0
    %240 = vmatpush1.msra.mxu0 0.0
    %241 = vmatprep.subr.mxu0 0.0
    %242 = vmatpush1.msra.mxu0 0.0
    %243 = vmatprep.subr.mxu0 0.0
    %244 = vmatpush1.msra.mxu0 0.0
    %245 = vmatprep.subr.mxu0 0.0
    %246 = vmatpush1.msra.mxu0 0.0
    %247 = vmatprep.subr.mxu0 0.0
    %248 = vmatpush1.msra.mxu0 0.0
    %249 = vmatprep.subr.mxu0 0.0
    %250 = vmatpush1.msra.mxu0 0.0
    %251 = vmatprep.subr.mxu0 0.0
    %252 = vmatpush1.msra.mxu0 0.0
    %253 = vmatprep.subr.mxu0 0.0
    %254 = vmatpush1.msra.mxu0 0.0
    %255 = vmatprep.subr.mxu0 0.0
    %256 = vmatpush1.msra.mxu0 0.0
    %257 = vmatprep.subr.mxu0 0.0
    %258 = vmatpush1.msra.mxu0 0.0
    %259 = vmatprep.subr.mxu0 0.0
    %260 = vmatpush1.msra.mxu0 0.0
    %261 = vmatprep.subr.mxu0 0.0
    %262 = vmatpush1.msra.mxu0 0.0
    %263 = vmatprep.subr.mxu0 0.0
    %264 = vmatpush1.msra.mxu0 0.0
    %265 = vmatprep.subr.mxu0 0.0
    %266 = vmatpush1.msra.mxu0 0.0
    %267 = vmatprep.subr.mxu0 0.0
    %268 = vmatpush1.msra.mxu0 0.0
    %269 = vmatprep.subr.mxu0 0.0
    %270 = vmatpush1.msra.mxu0 0.0
    %271 = vmatprep.subr.mxu0 0.0
    %272 = vmatpush1.msra.mxu0 0.0
    %273 = vmatprep.subr.mxu0 0.0
    %274 = vmatpush1.msra.mxu0 0.0
    %275 = vmatprep.subr.mxu0 0.0
    %276 = vmatpush1.msra.mxu0 0.0
    %277 = vmatprep.subr.mxu0 0.0
    %278 = vmatpush1.msra.mxu0 0.0
    %279 = vmatprep.subr.mxu0 0.0
    %280 = vmatpush1.msra.mxu0 0.0
    %281 = vmatprep.mubr.f32.mxu0 0.0
    %v282 = vand.u32 %v192, 4294901760
    %v283 = vsub.f32 %v192, %v282
    %v284 = vand.u32 %v283, 4294901760
    %v285 = vsub.f32 %v283, %v284
    %v286 = vand.u32 %v285, 4294901760
    %287 = vmatmul.mubr.f32.gmra.mrb[0].mxu0 %v286
    %v288 = vpop.f32.mrb[0].mxu0
    %v289 = vadd.f32 0.0, %v288
    %v290 = vpop.f32.mrb[0].mxu0
    %291 = vmatprep.mubr.f32.mxu0 0.0
    %v292 = vand.u32 %v195, 4294901760
    %v293 = vsub.f32 %v195, %v292
    %v294 = vand.u32 %v293, 4294901760
    %v295 = vsub.f32 %v293, %v294
    %v296 = vand.u32 %v295, 4294901760
    %297 = vmatmul.mubr.f32.gmra.mrb[0].mxu0 %v296
    %v298 = vpop.f32.mrb[0].mxu0
    %v299 = vadd.f32 0.0, %v298
    %v300 = vpop.f32.mrb[0].mxu0
    %301 = vmatprep.mubr.f32.mxu0 0.0
    %v302 = vand.u32 %v198, 4294901760
    %v303 = vsub.f32 %v198, %v302
    %v304 = vand.u32 %v303, 4294901760
    %v305 = vsub.f32 %v303, %v304
    %v306 = vand.u32 %v305, 4294901760
    %307 = vmatmul.mubr.f32.gmra.mrb[0].mxu0 %v306
    %v308 = vpop.f32.mrb[0].mxu0
    %v309 = vadd.f32 0.0, %v308
    %v310 = vpop.f32.mrb[0].mxu0
    %311 = vmatprep.mubr.f32.mxu0 0.0
    %v312 = vand.u32 %v201, 4294901760
    %v313 = vsub.f32 %v201, %v312
    %v314 = vand.u32 %v313, 4294901760
    %v315 = vsub.f32 %v313, %v314
    %v316 = vand.u32 %v315, 4294901760
    %317 = vmatmul.mubr.f32.gmra.mrb[0].mxu0 %v316
    %v318 = vpop.f32.mrb[0].mxu0
    %v319 = vadd.f32 0.0, %v318
    %v320 = vpop.f32.mrb[0].mxu0
    %321 = vmatprep.mubr.f32.mxu0 0.0
    %v322 = vand.u32 %v204, 4294901760
    %v323 = vsub.f32 %v204, %v322
    %v324 = vand.u32 %v323, 4294901760
    %v325 = vsub.f32 %v323, %v324
    %v326 = vand.u32 %v325, 4294901760
    %327 = vmatmul.mubr.f32.gmra.mrb[0].mxu0 %v326
    %v328 = vpop.f32.mrb[0].mxu0
    %v329 = vadd.f32 0.0, %v328
    %v330 = vpop.f32.mrb[0].mxu0
    %331 = vmatprep.mubr.f32.mxu0 0.0
    %v332 = vand.u32 %v207, 4294901760
    %v333 = vsub.f32 %v207, %v332
    %v334 = vand.u32 %v333, 4294901760
    %v335 = vsub.f32 %v333, %v334
    %v336 = vand.u32 %v335, 4294901760
    %337 = vmatmul.mubr.f32.gmra.mrb[0].mxu0 %v336
    %v338 = vpop.f32.mrb[0].mxu0
    %v339 = vadd.f32 0.0, %v338
    %v340 = vpop.f32.mrb[0].mxu0
    %341 = vmatprep.mubr.f32.mxu0 0.0
    %v342 = vand.u32 %v210, 4294901760
    %v343 = vsub.f32 %v210, %v342
    %v344 = vand.u32 %v343, 4294901760
    %v345 = vsub.f32 %v343, %v344
    %v346 = vand.u32 %v345, 4294901760
    %347 = vmatmul.mubr.f32.gmra.mrb[0].mxu0 %v346
    %v348 = vpop.f32.mrb[0].mxu0
    %v349 = vadd.f32 0.0, %v348
    %v350 = vpop.f32.mrb[0].mxu0
    %351 = vmatprep.mubr.f32.mxu0 0.0
    %v352 = vand.u32 %v213, 4294901760
    %v353 = vsub.f32 %v213, %v352
    %v354 = vand.u32 %v353, 4294901760
    %v355 = vsub.f32 %v353, %v354
    %v356 = vand.u32 %v355, 4294901760
    %357 = vmatmul.mubr.f32.gmra.mrb[0].mxu0 %v356
    %v358 = vpop.f32.mrb[0].mxu0
    %v359 = vadd.f32 0.0, %v358
    %v360 = vpop.f32.mrb[0].mxu0
    %361 = vdwg.mxu0
    %362 = vmatprep.subr.mxu0 0.0
    %v363 = vand.u32 %v189, 4294901760
    %v364 = vsub.f32 %v189, %v363
    %v365 = vand.u32 %v364, 4294901760
    %v366 = vsub.f32 %v364, %v365
    %v367 = vand.u32 %v366, 4294901760
    %368 = vmatpush1.msra.mxu0 %v367
    %369 = vmatprep.subr.mxu0 0.0
    %v370 = vand.u32 %v190, 4294901760
    %v371 = vsub.f32 %v190, %v370
    %v372 = vand.u32 %v371, 4294901760
    %v373 = vsub.f32 %v371, %v372
    %v374 = vand.u32 %v373, 4294901760
    %375 = vmatpush1.msra.mxu0 %v374
    %376 = vmatprep.subr.mxu0 0.0
    %377 = vmatpush1.msra.mxu0 0.0
    %378 = vmatprep.subr.mxu0 0.0
    %379 = vmatpush1.msra.mxu0 0.0
    %380 = vmatprep.subr.mxu0 0.0
    %381 = vmatpush1.msra.mxu0 0.0
    %382 = vmatprep.subr.mxu0 0.0
    %383 = vmatpush1.msra.mxu0 0.0
    %384 = vmatprep.subr.mxu0 0.0
    %385 = vmatpush1.msra.mxu0 0.0
    %386 = vmatprep.subr.mxu0 0.0
    %387 = vmatpush1.msra.mxu0 0.0
    %388 = vmatprep.subr.mxu0 0.0
    %389 = vmatpush1.msra.mxu0 0.0
    %390 = vmatprep.subr.mxu0 0.0
    %391 = vmatpush1.msra.mxu0 0.0
    %392 = vmatprep.subr.mxu0 0.0
    %393 = vmatpush1.msra.mxu0 0.0
    %394 = vmatprep.subr.mxu0 0.0
    %395 = vmatpush1.msra.mxu0 0.0
    %396 = vmatprep.subr.mxu0 0.0
    %397 = vmatpush1.msra.mxu0 0.0
    %398 = vmatprep.subr.mxu0 0.0
    %399 = vmatpush1.msra.mxu0 0.0
    %400 = vmatprep.subr.mxu0 0.0
    %401 = vmatpush1.msra.mxu0 0.0
    %402 = vmatprep.subr.mxu0 0.0
    %403 = vmatpush1.msra.mxu0 0.0
    %404 = vmatprep.subr.mxu0 0.0
    %405 = vmatpush1.msra.mxu0 0.0
    %406 = vmatprep.subr.mxu0 0.0
    %407 = vmatpush1.msra.mxu0 0.0
    %408 = vmatprep.subr.mxu0 0.0
    %409 = vmatpush1.msra.mxu0 0.0
    %410 = vmatprep.subr.mxu0 0.0
    %411 = vmatpush1.msra.mxu0 0.0
    %412 = vmatprep.subr.mxu0 0.0
    %413 = vmatpush1.msra.mxu0 0.0
    %414 = vmatprep.subr.mxu0 0.0
    %415 = vmatpush1.msra.mxu0 0.0
    %416 = vmatprep.subr.mxu0 0.0
    %417 = vmatpush1.msra.mxu0 0.0
    %418 = vmatprep.subr.mxu0 0.0
    %419 = vmatpush1.msra.mxu0 0.0
    %420 = vmatprep.subr.mxu0 0.0
    %421 = vmatpush1.msra.mxu0 0.0
    %422 = vmatprep.subr.mxu0 0.0
    %423 = vmatpush1.msra.mxu0 0.0
    %424 = vmatprep.subr.mxu0 0.0
    %425 = vmatpush1.msra.mxu0 0.0
    %426 = vmatprep.subr.mxu0 0.0
    %427 = vmatpush1.msra.mxu0 0.0
    %428 = vmatprep.subr.mxu0 0.0
    %429 = vmatpush1.msra.mxu0 0.0
    %430 = vmatprep.subr.mxu0 0.0
    %431 = vmatpush1.msra.mxu0 0.0
    %432 = vmatprep.subr.mxu0 0.0
    %433 = vmatpush1.msra.mxu0 0.0
    %434 = vmatprep.subr.mxu0 0.0
    %435 = vmatpush1.msra.mxu0 0.0
    %436 = vmatprep.mubr.f32.mxu0 0.0
    %v437 = vand.u32 %v192, 4294901760
    %438 = vmatmul.mubr.f32.gmra.mrb[0].mxu0 %v437
    %v439 = vpop.f32.mrb[0].mxu0
    %v440 = vadd.f32 %v289, %v439
    %v441 = vpop.f32.mrb[0].mxu0
    %442 = vmatprep.mubr.f32.mxu0 0.0
    %v443 = vand.u32 %v195, 4294901760
    %444 = vmatmul.mubr.f32.gmra.mrb[0].mxu0 %v443
    %v445 = vpop.f32.mrb[0].mxu0
    %v446 = vadd.f32 %v299, %v445
    %v447 = vpop.f32.mrb[0].mxu0
    %448 = vmatprep.mubr.f32.mxu0 0.0
    %v449 = vand.u32 %v198, 4294901760
    %450 = vmatmul.mubr.f32.gmra.mrb[0].mxu0 %v449
    %v451 = vpop.f32.mrb[0].mxu0
    %v452 = vadd.f32 %v309, %v451
    %v453 = vpop.f32.mrb[0].mxu0
    %454 = vmatprep.mubr.f32.mxu0 0.0
    %v455 = vand.u32 %v201, 4294901760
    %456 = vmatmul.mubr.f32.gmra.mrb[0].mxu0 %v455
    %v457 = vpop.f32.mrb[0].mxu0
    %v458 = vadd.f32 %v319, %v457
    %v459 = vpop.f32.mrb[0].mxu0
    %460 = vmatprep.mubr.f32.mxu0 0.0
    %v461 = vand.u32 %v204, 4294901760
    %462 = vmatmul.mubr.f32.gmra.mrb[0].mxu0 %v461
    %v463 = vpop.f32.mrb[0].mxu0
    %v464 = vadd.f32 %v329, %v463
    %v465 = vpop.f32.mrb[0].mxu0
    %466 = vmatprep.mubr.f32.mxu0 0.0
    %v467 = vand.u32 %v207, 4294901760
    %468 = vmatmul.mubr.f32.gmra.mrb[0].mxu0 %v467
    %v469 = vpop.f32.mrb[0].mxu0
    %v470 = vadd.f32 %v339, %v469
    %v471 = vpop.f32.mrb[0].mxu0
    %472 = vmatprep.mubr.f32.mxu0 0.0
    %v473 = vand.u32 %v210, 4294901760
    %474 = vmatmul.mubr.f32.gmra.mrb[0].mxu0 %v473
    %v475 = vpop.f32.mrb[0].mxu0
    %v476 = vadd.f32 %v349, %v475
    %v477 = vpop.f32.mrb[0].mxu0
    %478 = vmatprep.mubr.f32.mxu0 0.0
    %v479 = vand.u32 %v213, 4294901760
    %480 = vmatmul.mubr.f32.gmra.mrb[0].mxu0 %v479
    %v481 = vpop.f32.mrb[0].mxu0
    %v482 = vadd.f32 %v359, %v481
    %v483 = vpop.f32.mrb[0].mxu0
    %484 = vdwg.mxu0
    %485 = vmatprep.subr.mxu0 0.0
    %v486 = vand.u32 %v189, 4294901760
    %v487 = vsub.f32 %v189, %v486
    %488 = vmatpush1.msra.mxu0 %v487
    %489 = vmatprep.subr.mxu0 0.0
    %v490 = vand.u32 %v190, 4294901760
    %v491 = vsub.f32 %v190, %v490
    %492 = vmatpush1.msra.mxu0 %v491
    %493 = vmatprep.subr.mxu0 0.0
    %494 = vmatpush1.msra.mxu0 0.0
    %495 = vmatprep.subr.mxu0 0.0
    %496 = vmatpush1.msra.mxu0 0.0
    %497 = vmatprep.subr.mxu0 0.0
    %498 = vmatpush1.msra.mxu0 0.0
    %499 = vmatprep.subr.mxu0 0.0
    %500 = vmatpush1.msra.mxu0 0.0
    %501 = vmatprep.subr.mxu0 0.0
    %502 = vmatpush1.msra.mxu0 0.0
    %503 = vmatprep.subr.mxu0 0.0
    %504 = vmatpush1.msra.mxu0 0.0
    %505 = vmatprep.subr.mxu0 0.0
    %506 = vmatpush1.msra.mxu0 0.0
    %507 = vmatprep.subr.mxu0 0.0
    %508 = vmatpush1.msra.mxu0 0.0
    %509 = vmatprep.subr.mxu0 0.0
    %510 = vmatpush1.msra.mxu0 0.0
    %511 = vmatprep.subr.mxu0 0.0
    %512 = vmatpush1.msra.mxu0 0.0
    %513 = vmatprep.subr.mxu0 0.0
    %514 = vmatpush1.msra.mxu0 0.0
    %515 = vmatprep.subr.mxu0 0.0
    %516 = vmatpush1.msra.mxu0 0.0
    %517 = vmatprep.subr.mxu0 0.0
    %518 = vmatpush1.msra.mxu0 0.0
    %519 = vmatprep.subr.mxu0 0.0
    %520 = vmatpush1.msra.mxu0 0.0
    %521 = vmatprep.subr.mxu0 0.0
    %522 = vmatpush1.msra.mxu0 0.0
    %523 = vmatprep.subr.mxu0 0.0
    %524 = vmatpush1.msra.mxu0 0.0
    %525 = vmatprep.subr.mxu0 0.0
    %526 = vmatpush1.msra.mxu0 0.0
    %527 = vmatprep.subr.mxu0 0.0
    %528 = vmatpush1.msra.mxu0 0.0
    %529 = vmatprep.subr.mxu0 0.0
    %530 = vmatpush1.msra.mxu0 0.0
    %531 = vmatprep.subr.mxu0 0.0
    %532 = vmatpush1.msra.mxu0 0.0
    %533 = vmatprep.subr.mxu0 0.0
    %534 = vmatpush1.msra.mxu0 0.0
    %535 = vmatprep.subr.mxu0 0.0
    %536 = vmatpush1.msra.mxu0 0.0
    %537 = vmatprep.subr.mxu0 0.0
    %538 = vmatpush1.msra.mxu0 0.0
    %539 = vmatprep.subr.mxu0 0.0
    %540 = vmatpush1.msra.mxu0 0.0
    %541 = vmatprep.subr.mxu0 0.0
    %542 = vmatpush1.msra.mxu0 0.0
    %543 = vmatprep.subr.mxu0 0.0
    %544 = vmatpush1.msra.mxu0 0.0
    %545 = vmatprep.subr.mxu0 0.0
    %546 = vmatpush1.msra.mxu0 0.0
    %547 = vmatprep.subr.mxu0 0.0
    %548 = vmatpush1.msra.mxu0 0.0
    %549 = vmatprep.subr.mxu0 0.0
    %550 = vmatpush1.msra.mxu0 0.0
    %551 = vmatprep.subr.mxu0 0.0
    %552 = vmatpush1.msra.mxu0 0.0
    %553 = vmatprep.mubr.f32.mxu0 0.0
    %v554 = vand.u32 %v192, 4294901760
    %v555 = vsub.f32 %v192, %v554
    %556 = vmatmul.mubr.f32.gmra.mrb[0].mxu0 %v555
    %v557 = vpop.f32.mrb[0].mxu0
    %v558 = vadd.f32 %v440, %v557
    %v559 = vpop.f32.mrb[0].mxu0
    %560 = vmatprep.mubr.f32.mxu0 0.0
    %v561 = vand.u32 %v195, 4294901760
    %v562 = vsub.f32 %v195, %v561
    %563 = vmatmul.mubr.f32.gmra.mrb[0].mxu0 %v562
    %v564 = vpop.f32.mrb[0].mxu0
    %v565 = vadd.f32 %v446, %v564
    %v566 = vpop.f32.mrb[0].mxu0
    %567 = vmatprep.mubr.f32.mxu0 0.0
    %v568 = vand.u32 %v198, 4294901760
    %v569 = vsub.f32 %v198, %v568
    %570 = vmatmul.mubr.f32.gmra.mrb[0].mxu0 %v569
    %v571 = vpop.f32.mrb[0].mxu0
    %v572 = vadd.f32 %v452, %v571
    %v573 = vpop.f32.mrb[0].mxu0
    %574 = vmatprep.mubr.f32.mxu0 0.0
    %v575 = vand.u32 %v201, 4294901760
    %v576 = vsub.f32 %v201, %v575
    %577 = vmatmul.mubr.f32.gmra.mrb[0].mxu0 %v576
    %v578 = vpop.f32.mrb[0].mxu0
    %v579 = vadd.f32 %v458, %v578
    %v580 = vpop.f32.mrb[0].mxu0
    %581 = vmatprep.mubr.f32.mxu0 0.0
    %v582 = vand.u32 %v204, 4294901760
    %v583 = vsub.f32 %v204, %v582
    %584 = vmatmul.mubr.f32.gmra.mrb[0].mxu0 %v583
    %v585 = vpop.f32.mrb[0].mxu0
    %v586 = vadd.f32 %v464, %v585
    %v587 = vpop.f32.mrb[0].mxu0
    %588 = vmatprep.mubr.f32.mxu0 0.0
    %v589 = vand.u32 %v207, 4294901760
    %v590 = vsub.f32 %v207, %v589
    %591 = vmatmul.mubr.f32.gmra.mrb[0].mxu0 %v590
    %v592 = vpop.f32.mrb[0].mxu0
    %v593 = vadd.f32 %v470, %v592
    %v594 = vpop.f32.mrb[0].mxu0
    %595 = vmatprep.mubr.f32.mxu0 0.0
    %v596 = vand.u32 %v210, 4294901760
    %v597 = vsub.f32 %v210, %v596
    %598 = vmatmul.mubr.f32.gmra.mrb[0].mxu0 %v597
    %v599 = vpop.f32.mrb[0].mxu0
    %v600 = vadd.f32 %v476, %v599
    %v601 = vpop.f32.mrb[0].mxu0
    %602 = vmatprep.mubr.f32.mxu0 0.0
    %v603 = vand.u32 %v213, 4294901760
    %v604 = vsub.f32 %v213, %v603
    %605 = vmatmul.mubr.f32.gmra.mrb[0].mxu0 %v604
    %v606 = vpop.f32.mrb[0].mxu0
    %v607 = vadd.f32 %v482, %v606
    %v608 = vpop.f32.mrb[0].mxu0
    %609 = vdwg.mxu0
    %610 = vmatprep.subr.mxu0 0.0
    %v611 = vand.u32 %v189, 4294901760
    %612 = vmatpush1.msra.mxu0 %v611
    %613 = vmatprep.subr.mxu0 0.0
    %v614 = vand.u32 %v190, 4294901760
    %615 = vmatpush1.msra.mxu0 %v614
    %616 = vmatprep.subr.mxu0 0.0
    %617 = vmatpush1.msra.mxu0 0.0
    %618 = vmatprep.subr.mxu0 0.0
    %619 = vmatpush1.msra.mxu0 0.0
    %620 = vmatprep.subr.mxu0 0.0
    %621 = vmatpush1.msra.mxu0 0.0
    %622 = vmatprep.subr.mxu0 0.0
    %623 = vmatpush1.msra.mxu0 0.0
    %624 = vmatprep.subr.mxu0 0.0
    %625 = vmatpush1.msra.mxu0 0.0
    %626 = vmatprep.subr.mxu0 0.0
    %627 = vmatpush1.msra.mxu0 0.0
    %628 = vmatprep.subr.mxu0 0.0
    %629 = vmatpush1.msra.mxu0 0.0
    %630 = vmatprep.subr.mxu0 0.0
    %631 = vmatpush1.msra.mxu0 0.0
    %632 = vmatprep.subr.mxu0 0.0
    %633 = vmatpush1.msra.mxu0 0.0
    %634 = vmatprep.subr.mxu0 0.0
    %635 = vmatpush1.msra.mxu0 0.0
    %636 = vmatprep.subr.mxu0 0.0
    %637 = vmatpush1.msra.mxu0 0.0
    %638 = vmatprep.subr.mxu0 0.0
    %639 = vmatpush1.msra.mxu0 0.0
    %640 = vmatprep.subr.mxu0 0.0
    %641 = vmatpush1.msra.mxu0 0.0
    %642 = vmatprep.subr.mxu0 0.0
    %643 = vmatpush1.msra.mxu0 0.0
    %644 = vmatprep.subr.mxu0 0.0
    %645 = vmatpush1.msra.mxu0 0.0
    %646 = vmatprep.subr.mxu0 0.0
    %647 = vmatpush1.msra.mxu0 0.0
    %648 = vmatprep.subr.mxu0 0.0
    %649 = vmatpush1.msra.mxu0 0.0
    %650 = vmatprep.subr.mxu0 0.0
    %651 = vmatpush1.msra.mxu0 0.0
    %652 = vmatprep.subr.mxu0 0.0
    %653 = vmatpush1.msra.mxu0 0.0
    %654 = vmatprep.subr.mxu0 0.0
    %655 = vmatpush1.msra.mxu0 0.0
    %656 = vmatprep.subr.mxu0 0.0
    %657 = vmatpush1.msra.mxu0 0.0
    %658 = vmatprep.subr.mxu0 0.0
    %659 = vmatpush1.msra.mxu0 0.0
    %660 = vmatprep.subr.mxu0 0.0
    %661 = vmatpush1.msra.mxu0 0.0
    %662 = vmatprep.subr.mxu0 0.0
    %663 = vmatpush1.msra.mxu0 0.0
    %664 = vmatprep.subr.mxu0 0.0
    %665 = vmatpush1.msra.mxu0 0.0
    %666 = vmatprep.subr.mxu0 0.0
    %667 = vmatpush1.msra.mxu0 0.0
    %668 = vmatprep.subr.mxu0 0.0
    %669 = vmatpush1.msra.mxu0 0.0
    %670 = vmatprep.subr.mxu0 0.0
    %671 = vmatpush1.msra.mxu0 0.0
    %672 = vmatprep.subr.mxu0 0.0
    %673 = vmatpush1.msra.mxu0 0.0
    %674 = vmatprep.subr.mxu0 0.0
    %675 = vmatpush1.msra.mxu0 0.0
    %676 = vmatprep.mubr.f32.mxu0 0.0
    %v677 = vand.u32 %v192, 4294901760
    %v678 = vsub.f32 %v192, %v677
    %v679 = vand.u32 %v678, 4294901760
    %680 = vmatmul.mubr.f32.gmra.mrb[0].mxu0 %v679
    %v681 = vpop.f32.mrb[0].mxu0
    %v682 = vadd.f32 %v558, %v681
    %v683 = vpop.f32.mrb[0].mxu0
    %684 = vmatprep.mubr.f32.mxu0 0.0
    %v685 = vand.u32 %v195, 4294901760
    %v686 = vsub.f32 %v195, %v685
    %v687 = vand.u32 %v686, 4294901760
    %688 = vmatmul.mubr.f32.gmra.mrb[0].mxu0 %v687
    %v689 = vpop.f32.mrb[0].mxu0
    %v690 = vadd.f32 %v565, %v689
    %v691 = vpop.f32.mrb[0].mxu0
    %692 = vmatprep.mubr.f32.mxu0 0.0
    %v693 = vand.u32 %v198, 4294901760
    %v694 = vsub.f32 %v198, %v693
    %v695 = vand.u32 %v694, 4294901760
    %696 = vmatmul.mubr.f32.gmra.mrb[0].mxu0 %v695
    %v697 = vpop.f32.mrb[0].mxu0
    %v698 = vadd.f32 %v572, %v697
    %v699 = vpop.f32.mrb[0].mxu0
    %700 = vmatprep.mubr.f32.mxu0 0.0
    %v701 = vand.u32 %v201, 4294901760
    %v702 = vsub.f32 %v201, %v701
    %v703 = vand.u32 %v702, 4294901760
    %704 = vmatmul.mubr.f32.gmra.mrb[0].mxu0 %v703
    %v705 = vpop.f32.mrb[0].mxu0
    %v706 = vadd.f32 %v579, %v705
    %v707 = vpop.f32.mrb[0].mxu0
    %708 = vmatprep.mubr.f32.mxu0 0.0
    %v709 = vand.u32 %v204, 4294901760
    %v710 = vsub.f32 %v204, %v709
    %v711 = vand.u32 %v710, 4294901760
    %712 = vmatmul.mubr.f32.gmra.mrb[0].mxu0 %v711
    %v713 = vpop.f32.mrb[0].mxu0
    %v714 = vadd.f32 %v586, %v713
    %v715 = vpop.f32.mrb[0].mxu0
    %716 = vmatprep.mubr.f32.mxu0 0.0
    %v717 = vand.u32 %v207, 4294901760
    %v718 = vsub.f32 %v207, %v717
    %v719 = vand.u32 %v718, 4294901760
    %720 = vmatmul.mubr.f32.gmra.mrb[0].mxu0 %v719
    %v721 = vpop.f32.mrb[0].mxu0
    %v722 = vadd.f32 %v593, %v721
    %v723 = vpop.f32.mrb[0].mxu0
    %724 = vmatprep.mubr.f32.mxu0 0.0
    %v725 = vand.u32 %v210, 4294901760
    %v726 = vsub.f32 %v210, %v725
    %v727 = vand.u32 %v726, 4294901760
    %728 = vmatmul.mubr.f32.gmra.mrb[0].mxu0 %v727
    %v729 = vpop.f32.mrb[0].mxu0
    %v730 = vadd.f32 %v600, %v729
    %v731 = vpop.f32.mrb[0].mxu0
    %732 = vmatprep.mubr.f32.mxu0 0.0
    %v733 = vand.u32 %v213, 4294901760
    %v734 = vsub.f32 %v213, %v733
    %v735 = vand.u32 %v734, 4294901760
    %736 = vmatmul.mubr.f32.gmra.mrb[0].mxu0 %v735
    %v737 = vpop.f32.mrb[0].mxu0
    %v738 = vadd.f32 %v607, %v737
    %v739 = vpop.f32.mrb[0].mxu0
    %740 = vdwg.mxu0
    %741 = vmatprep.subr.mxu0 0.0
    %v742 = vand.u32 %v189, 4294901760
    %v743 = vsub.f32 %v189, %v742
    %v744 = vand.u32 %v743, 4294901760
    %745 = vmatpush1.msra.mxu0 %v744
    %746 = vmatprep.subr.mxu0 0.0
    %v747 = vand.u32 %v190, 4294901760
    %v748 = vsub.f32 %v190, %v747
    %v749 = vand.u32 %v748, 4294901760
    %750 = vmatpush1.msra.mxu0 %v749
    %751 = vmatprep.subr.mxu0 0.0
    %752 = vmatpush1.msra.mxu0 0.0
    %753 = vmatprep.subr.mxu0 0.0
    %754 = vmatpush1.msra.mxu0 0.0
    %755 = vmatprep.subr.mxu0 0.0
    %756 = vmatpush1.msra.mxu0 0.0
    %757 = vmatprep.subr.mxu0 0.0
    %758 = vmatpush1.msra.mxu0 0.0
    %759 = vmatprep.subr.mxu0 0.0
    %760 = vmatpush1.msra.mxu0 0.0
    %761 = vmatprep.subr.mxu0 0.0
    %762 = vmatpush1.msra.mxu0 0.0
    %763 = vmatprep.subr.mxu0 0.0
    %764 = vmatpush1.msra.mxu0 0.0
    %765 = vmatprep.subr.mxu0 0.0
    %766 = vmatpush1.msra.mxu0 0.0
    %767 = vmatprep.subr.mxu0 0.0
    %768 = vmatpush1.msra.mxu0 0.0
    %769 = vmatprep.subr.mxu0 0.0
    %770 = vmatpush1.msra.mxu0 0.0
    %771 = vmatprep.subr.mxu0 0.0
    %772 = vmatpush1.msra.mxu0 0.0
    %773 = vmatprep.subr.mxu0 0.0
    %774 = vmatpush1.msra.mxu0 0.0
    %775 = vmatprep.subr.mxu0 0.0
    %776 = vmatpush1.msra.mxu0 0.0
    %777 = vmatprep.subr.mxu0 0.0
    %778 = vmatpush1.msra.mxu0 0.0
    %779 = vmatprep.subr.mxu0 0.0
    %780 = vmatpush1.msra.mxu0 0.0
    %781 = vmatprep.subr.mxu0 0.0
    %782 = vmatpush1.msra.mxu0 0.0
    %783 = vmatprep.subr.mxu0 0.0
    %784 = vmatpush1.msra.mxu0 0.0
    %785 = vmatprep.subr.mxu0 0.0
    %786 = vmatpush1.msra.mxu0 0.0
    %787 = vmatprep.subr.mxu0 0.0
    %788 = vmatpush1.msra.mxu0 0.0
    %789 = vmatprep.subr.mxu0 0.0
    %790 = vmatpush1.msra.mxu0 0.0
    %791 = vmatprep.subr.mxu0 0.0
    %792 = vmatpush1.msra.mxu0 0.0
    %793 = vmatprep.subr.mxu0 0.0
    %794 = vmatpush1.msra.mxu0 0.0
    %795 = vmatprep.subr.mxu0 0.0
    %796 = vmatpush1.msra.mxu0 0.0
    %797 = vmatprep.subr.mxu0 0.0
    %798 = vmatpush1.msra.mxu0 0.0
    %799 = vmatprep.subr.mxu0 0.0
    %800 = vmatpush1.msra.mxu0 0.0
    %801 = vmatprep.subr.mxu0 0.0
    %802 = vmatpush1.msra.mxu0 0.0
    %803 = vmatprep.subr.mxu0 0.0
    %804 = vmatpush1.msra.mxu0 0.0
    %805 = vmatprep.subr.mxu0 0.0
    %806 = vmatpush1.msra.mxu0 0.0
    %807 = vmatprep.subr.mxu0 0.0
    %808 = vmatpush1.msra.mxu0 0.0
    %809 = vmatprep.subr.mxu0 0.0
    %810 = vmatpush1.msra.mxu0 0.0
    %811 = vmatprep.mubr.f32.mxu0 0.0
    %v812 = vand.u32 %v192, 4294901760
    %813 = vmatmul.mubr.f32.gmra.mrb[0].mxu0 %v812
    %v814 = vpop.f32.mrb[0].mxu0
    %v815 = vadd.f32 %v682, %v814
    %v816 = vpop.f32.mrb[0].mxu0
    %817 = vmatprep.mubr.f32.mxu0 0.0
    %v818 = vand.u32 %v195, 4294901760
    %819 = vmatmul.mubr.f32.gmra.mrb[0].mxu0 %v818
    %v820 = vpop.f32.mrb[0].mxu0
    %v821 = vadd.f32 %v690, %v820
    %v822 = vpop.f32.mrb[0].mxu0
    %823 = vmatprep.mubr.f32.mxu0 0.0
    %v824 = vand.u32 %v198, 4294901760
    %825 = vmatmul.mubr.f32.gmra.mrb[0].mxu0 %v824
    %v826 = vpop.f32.mrb[0].mxu0
    %v827 = vadd.f32 %v698, %v826
    %v828 = vpop.f32.mrb[0].mxu0
    %829 = vmatprep.mubr.f32.mxu0 0.0
    %v830 = vand.u32 %v201, 4294901760
    %831 = vmatmul.mubr.f32.gmra.mrb[0].mxu0 %v830
    %v832 = vpop.f32.mrb[0].mxu0
    %v833 = vadd.f32 %v706, %v832
    %v834 = vpop.f32.mrb[0].mxu0
    %835 = vmatprep.mubr.f32.mxu0 0.0
    %v836 = vand.u32 %v204, 4294901760
    %837 = vmatmul.mubr.f32.gmra.mrb[0].mxu0 %v836
    %v838 = vpop.f32.mrb[0].mxu0
    %v839 = vadd.f32 %v714, %v838
    %v840 = vpop.f32.mrb[0].mxu0
    %841 = vmatprep.mubr.f32.mxu0 0.0
    %v842 = vand.u32 %v207, 4294901760
    %843 = vmatmul.mubr.f32.gmra.mrb[0].mxu0 %v842
    %v844 = vpop.f32.mrb[0].mxu0
    %v845 = vadd.f32 %v722, %v844
    %v846 = vpop.f32.mrb[0].mxu0
    %847 = vmatprep.mubr.f32.mxu0 0.0
    %v848 = vand.u32 %v210, 4294901760
    %849 = vmatmul.mubr.f32.gmra.mrb[0].mxu0 %v848
    %v850 = vpop.f32.mrb[0].mxu0
    %v851 = vadd.f32 %v730, %v850
    %v852 = vpop.f32.mrb[0].mxu0
    %853 = vmatprep.mubr.f32.mxu0 0.0
    %v854 = vand.u32 %v213, 4294901760
    %855 = vmatmul.mubr.f32.gmra.mrb[0].mxu0 %v854
    %v856 = vpop.f32.mrb[0].mxu0
    %v857 = vadd.f32 %v738, %v856
    %v858 = vpop.f32.mrb[0].mxu0
    %859 = vdwg.mxu0
    %860 = vmatprep.subr.mxu0 0.0
    %v861 = vand.u32 %v189, 4294901760
    %862 = vmatpush1.msra.mxu0 %v861
    %863 = vmatprep.subr.mxu0 0.0
    %v864 = vand.u32 %v190, 4294901760
    %865 = vmatpush1.msra.mxu0 %v864
    %866 = vmatprep.subr.mxu0 0.0
    %867 = vmatpush1.msra.mxu0 0.0
    %868 = vmatprep.subr.mxu0 0.0
    %869 = vmatpush1.msra.mxu0 0.0
    %870 = vmatprep.subr.mxu0 0.0
    %871 = vmatpush1.msra.mxu0 0.0
    %872 = vmatprep.subr.mxu0 0.0
    %873 = vmatpush1.msra.mxu0 0.0
    %874 = vmatprep.subr.mxu0 0.0
    %875 = vmatpush1.msra.mxu0 0.0
    %876 = vmatprep.subr.mxu0 0.0
    %877 = vmatpush1.msra.mxu0 0.0
    %878 = vmatprep.subr.mxu0 0.0
    %879 = vmatpush1.msra.mxu0 0.0
    %880 = vmatprep.subr.mxu0 0.0
    %881 = vmatpush1.msra.mxu0 0.0
    %882 = vmatprep.subr.mxu0 0.0
    %883 = vmatpush1.msra.mxu0 0.0
    %884 = vmatprep.subr.mxu0 0.0
    %885 = vmatpush1.msra.mxu0 0.0
    %886 = vmatprep.subr.mxu0 0.0
    %887 = vmatpush1.msra.mxu0 0.0
    %888 = vmatprep.subr.mxu0 0.0
    %889 = vmatpush1.msra.mxu0 0.0
    %890 = vmatprep.subr.mxu0 0.0
    %891 = vmatpush1.msra.mxu0 0.0
    %892 = vmatprep.subr.mxu0 0.0
    %893 = vmatpush1.msra.mxu0 0.0
    %894 = vmatprep.subr.mxu0 0.0
    %895 = vmatpush1.msra.mxu0 0.0
    %896 = vmatprep.subr.mxu0 0.0
    %897 = vmatpush1.msra.mxu0 0.0
    %898 = vmatprep.subr.mxu0 0.0
    %899 = vmatpush1.msra.mxu0 0.0
    %900 = vmatprep.subr.mxu0 0.0
    %901 = vmatpush1.msra.mxu0 0.0
    %902 = vmatprep.subr.mxu0 0.0
    %903 = vmatpush1.msra.mxu0 0.0
    %904 = vmatprep.subr.mxu0 0.0
    %905 = vmatpush1.msra.mxu0 0.0
    %906 = vmatprep.subr.mxu0 0.0
    %907 = vmatpush1.msra.mxu0 0.0
    %908 = vmatprep.subr.mxu0 0.0
    %909 = vmatpush1.msra.mxu0 0.0
    %910 = vmatprep.subr.mxu0 0.0
    %911 = vmatpush1.msra.mxu0 0.0
    %912 = vmatprep.subr.mxu0 0.0
    %913 = vmatpush1.msra.mxu0 0.0
    %914 = vmatprep.subr.mxu0 0.0
    %915 = vmatpush1.msra.mxu0 0.0
    %916 = vmatprep.subr.mxu0 0.0
    %917 = vmatpush1.msra.mxu0 0.0
    %918 = vmatprep.subr.mxu0 0.0
    %919 = vmatpush1.msra.mxu0 0.0
    %920 = vmatprep.subr.mxu0 0.0
    %921 = vmatpush1.msra.mxu0 0.0
    %922 = vmatprep.subr.mxu0 0.0
    %923 = vmatpush1.msra.mxu0 0.0
    %924 = vmatprep.subr.mxu0 0.0
    %925 = vmatpush1.msra.mxu0 0.0
    %926 = vmatprep.mubr.f32.mxu0 0.0
    %v927 = vand.u32 %v192, 4294901760
    %928 = vmatmul.mubr.f32.gmra.mrb[0].mxu0 %v927
    %v929 = vpop.f32.mrb[0].mxu0
    %v930 = vadd.f32 %v815, %v929
    %v931 = vpop.f32.mrb[0].mxu0
    %932 = vmatprep.mubr.f32.mxu0 0.0
    %v933 = vand.u32 %v195, 4294901760
    %934 = vmatmul.mubr.f32.gmra.mrb[0].mxu0 %v933
    %v935 = vpop.f32.mrb[0].mxu0
    %v936 = vadd.f32 %v821, %v935
    %v937 = vpop.f32.mrb[0].mxu0
    %938 = vmatprep.mubr.f32.mxu0 0.0
    %v939 = vand.u32 %v198, 4294901760
    %940 = vmatmul.mubr.f32.gmra.mrb[0].mxu0 %v939
    %v941 = vpop.f32.mrb[0].mxu0
    %v942 = vadd.f32 %v827, %v941
    %v943 = vpop.f32.mrb[0].mxu0
    %944 = vmatprep.mubr.f32.mxu0 0.0
    %v945 = vand.u32 %v201, 4294901760
    %946 = vmatmul.mubr.f32.gmra.mrb[0].mxu0 %v945
    %v947 = vpop.f32.mrb[0].mxu0
    %v948 = vadd.f32 %v833, %v947
    %v949 = vpop.f32.mrb[0].mxu0
    %950 = vmatprep.mubr.f32.mxu0 0.0
    %v951 = vand.u32 %v204, 4294901760
    %952 = vmatmul.mubr.f32.gmra.mrb[0].mxu0 %v951
    %v953 = vpop.f32.mrb[0].mxu0
    %v954 = vadd.f32 %v839, %v953
    %v955 = vpop.f32.mrb[0].mxu0
    %956 = vmatprep.mubr.f32.mxu0 0.0
    %v957 = vand.u32 %v207, 4294901760
    %958 = vmatmul.mubr.f32.gmra.mrb[0].mxu0 %v957
    %v959 = vpop.f32.mrb[0].mxu0
    %v960 = vadd.f32 %v845, %v959
    %v961 = vpop.f32.mrb[0].mxu0
    %962 = vmatprep.mubr.f32.mxu0 0.0
    %v963 = vand.u32 %v210, 4294901760
    %964 = vmatmul.mubr.f32.gmra.mrb[0].mxu0 %v963
    %v965 = vpop.f32.mrb[0].mxu0
    %v966 = vadd.f32 %v851, %v965
    %v967 = vpop.f32.mrb[0].mxu0
    %968 = vmatprep.mubr.f32.mxu0 0.0
    %v969 = vand.u32 %v213, 4294901760
    %970 = vmatmul.mubr.f32.gmra.mrb[0].mxu0 %v969
    %v971 = vpop.f32.mrb[0].mxu0
    %v972 = vadd.f32 %v857, %v971
    %v973 = vpop.f32.mrb[0].mxu0
    %974 = vdwg.mxu0
    %vm975 = vcmask 64512
    %976 = vst.msk [vmem:[#allocation2] sm:$0xff] %vm975, %v930
    %977 = vst.msk [vmem:[#allocation2 + $0x8] sm:$0xff] %vm975, %v936
    %978 = vst.msk [vmem:[#allocation2 + $0x10] sm:$0xff] %vm975, %v942
    %979 = vst.msk [vmem:[#allocation2 + $0x18] sm:$0xff] %vm975, %v948
    %980 = vst.msk [vmem:[#allocation2 + $0x20] sm:$0xff] %vm975, %v954
    %981 = vst.msk [vmem:[#allocation2 + $0x28] sm:$0xff] %vm975, %v960
    %982 = vst.msk [vmem:[#allocation2 + $0x30] sm:$0xff] %vm975, %v966
    %983 = vst.msk [vmem:[#allocation2 + $0x38] sm:$0xff] %vm975, %v972
    %v984 = vld [vmem:[#allocation2] ss:$2 sm:$0xff]
    %s985 = scalar_lea.vmem [#allocation2], 16
    %v986 = vld [vmem:[%s985] ss:$2 sm:$0xff]
    %s987 = scalar_lea.vmem [#allocation2], 32
    %v988 = vld [vmem:[%s987] ss:$2 sm:$0xff]
    %s989 = scalar_lea.vmem [#allocation2], 48
    %v990 = vld [vmem:[%s989] ss:$2 sm:$0xff]
    %s991 = scalar_lea.vmem [#allocation2], 1
    %v992 = vld [vmem:[%s991] ss:$2 sm:$0xff]
    %s993 = scalar_lea.vmem [#allocation2], 17
    %v994 = vld [vmem:[%s993] ss:$2 sm:$0xff]
    %s995 = scalar_lea.vmem [#allocation2], 33
    %v996 = vld [vmem:[%s995] ss:$2 sm:$0xff]
    %s997 = scalar_lea.vmem [#allocation2], 49
    %v998 = vld [vmem:[%s997] ss:$2 sm:$0xff]
    %v999 = vand.u32 2147483647, %v984
    %v1000 = vand.u32 2147483647, %v986
    %v1001 = vand.u32 2147483647, %v988
    %v1002 = vand.u32 2147483647, %v990
    %v1003 = vand.u32 2147483647, %v992
    %v1004 = vand.u32 2147483647, %v994
    %v1005 = vand.u32 2147483647, %v996
    %v1006 = vand.u32 2147483647, %v998
    %v1007 = vadd.f32 %v999, %v1003
    %v1008 = vadd.f32 %v1000, %v1004
    %v1009 = vadd.f32 %v1001, %v1005
    %v1010 = vadd.f32 %v1002, %v1006
    %v1011 = vsel %vm975, %v1007, 0.0
    %v1012 = vsel %vm975, %v1008, 0.0
    %v1013 = vadd.f32 %v1011, %v1012
    %v1014 = vsel %vm975, %v1009, 0.0
    %v1015 = vadd.f32 %v1013, %v1014
    %v1016 = vsel %vm975, %v1010, 0.0
    %v1017 = vadd.f32 %v1015, %v1016
    %1018 = vadd.xlane.f32.xlu0 %v1017
    %v1019 = vpop.xlane.xlu0 %1018
    %v1020 = vrot.slane %v1019, 4
    %v1021 = vadd.f32 %v1019, %v1020
    %v1022 = vrot.slane %v1021, 2
    %v1023 = vadd.f32 %v1021, %v1022
    %v1024 = vrot.slane %v1023, 1
    %v1025 = vadd.f32 %v1023, %v1024
    %s1026 = vtos %v1025
    %s1027 = scalar_lea.smem [#allocation11], 1
    %1028 = sst [smem:[%s1027]] %s1026
    %v1029 = vadd.f32 %v984, %v992
    %v1030 = vadd.f32 %v986, %v994
    %v1031 = vadd.f32 %v988, %v996
    %v1032 = vadd.f32 %v990, %v998
    %v1033 = vld [vmem:[%s3] sm:$0xff]
    %v1035 = vsel %vm975, %v1029, 0
    %v1038 = vsel %vm975, %v1030, 0
    %v1041 = vsel %vm975, %v1031, 0
    %v1044 = vsel %vm975, %v1032, 0
    %1046 = vmatprep.subr.mxu0 0.0
    %v1047 = vand.u32 %v1033, 4294901760
    %1048 = vmatpush1.msra.mxu0 %v1047
    %1049 = vmatprep.subr.mxu0 0.0
    %1050 = vmatpush1.msra.mxu0 0.0
    %1051 = vmatprep.subr.mxu0 0.0
    %1052 = vmatpush1.msra.mxu0 0.0
    %1053 = vmatprep.subr.mxu0 0.0
    %1054 = vmatpush1.msra.mxu0 0.0
    %1055 = vmatprep.subr.mxu0 0.0
    %1056 = vmatpush1.msra.mxu0 0.0
    %1057 = vmatprep.subr.mxu0 0.0
    %1058 = vmatpush1.msra.mxu0 0.0
    %1059 = vmatprep.subr.mxu0 0.0
    %1060 = vmatpush1.msra.mxu0 0.0
    %1061 = vmatprep.subr.mxu0 0.0
    %1062 = vmatpush1.msra.mxu0 0.0
    %1063 = vmatprep.subr.mxu0 0.0
    %1064 = vmatpush1.msra.mxu0 0.0
    %1065 = vmatprep.subr.mxu0 0.0
    %1066 = vmatpush1.msra.mxu0 0.0
    %1067 = vmatprep.subr.mxu0 0.0
    %1068 = vmatpush1.msra.mxu0 0.0
    %1069 = vmatprep.subr.mxu0 0.0
    %1070 = vmatpush1.msra.mxu0 0.0
    %1071 = vmatprep.subr.mxu0 0.0
    %1072 = vmatpush1.msra.mxu0 0.0
    %1073 = vmatprep.subr.mxu0 0.0
    %1074 = vmatpush1.msra.mxu0 0.0
    %1075 = vmatprep.subr.mxu0 0.0
    %1076 = vmatpush1.msra.mxu0 0.0
    %1077 = vmatprep.subr.mxu0 0.0
    %1078 = vmatpush1.msra.mxu0 0.0
    %1079 = vmatprep.subr.mxu0 0.0
    %1080 = vmatpush1.msra.mxu0 0.0
    %1081 = vmatprep.subr.mxu0 0.0
    %1082 = vmatpush1.msra.mxu0 0.0
    %1083 = vmatprep.subr.mxu0 0.0
    %1084 = vmatpush1.msra.mxu0 0.0
    %1085 = vmatprep.subr.mxu0 0.0
    %1086 = vmatpush1.msra.mxu0 0.0
    %1087 = vmatprep.subr.mxu0 0.0
    %1088 = vmatpush1.msra.mxu0 0.0
    %1089 = vmatprep.subr.mxu0 0.0
    %1090 = vmatpush1.msra.mxu0 0.0
    %1091 = vmatprep.subr.mxu0 0.0
    %1092 = vmatpush1.msra.mxu0 0.0
    %1093 = vmatprep.subr.mxu0 0.0
    %1094 = vmatpush1.msra.mxu0 0.0
    %1095 = vmatprep.subr.mxu0 0.0
    %1096 = vmatpush1.msra.mxu0 0.0
    %1097 = vmatprep.subr.mxu0 0.0
    %1098 = vmatpush1.msra.mxu0 0.0
    %1099 = vmatprep.subr.mxu0 0.0
    %1100 = vmatpush1.msra.mxu0 0.0
    %1101 = vmatprep.subr.mxu0 0.0
    %1102 = vmatpush1.msra.mxu0 0.0
    %1103 = vmatprep.subr.mxu0 0.0
    %1104 = vmatpush1.msra.mxu0 0.0
    %1105 = vmatprep.subr.mxu0 0.0
    %1106 = vmatpush1.msra.mxu0 0.0
    %1107 = vmatprep.subr.mxu0 0.0
    %1108 = vmatpush1.msra.mxu0 0.0
    %1109 = vmatprep.subr.mxu0 0.0
    %1110 = vmatpush1.msra.mxu0 0.0
    %1111 = vmatprep.mubr.f32.mxu0 0.0
    %v1112 = vand.u32 %v1035, 4294901760
    %v1113 = vsub.f32 %v1035, %v1112
    %v1114 = vand.u32 %v1113, 4294901760
    %v1115 = vsub.f32 %v1113, %v1114
    %v1116 = vand.u32 %v1115, 4294901760
    %1117 = vmatmul.mubr.f32.gmra.mrb[0].mxu0 %v1116
    %v1118 = vpop.f32.mrb[0].mxu0
    %v1119 = vadd.f32 0.0, %v1118
    %v1120 = vpop.f32.mrb[0].mxu0
    %1121 = vmatprep.mubr.f32.mxu0 0.0
    %v1122 = vand.u32 %v1038, 4294901760
    %v1123 = vsub.f32 %v1038, %v1122
    %v1124 = vand.u32 %v1123, 4294901760
    %v1125 = vsub.f32 %v1123, %v1124
    %v1126 = vand.u32 %v1125, 4294901760
    %1127 = vmatmul.mubr.f32.gmra.mrb[0].mxu0 %v1126
    %v1128 = vpop.f32.mrb[0].mxu0
    %v1129 = vadd.f32 0.0, %v1128
    %v1130 = vpop.f32.mrb[0].mxu0
    %1131 = vmatprep.mubr.f32.mxu0 0.0
    %v1132 = vand.u32 %v1041, 4294901760
    %v1133 = vsub.f32 %v1041, %v1132
    %v1134 = vand.u32 %v1133, 4294901760
    %v1135 = vsub.f32 %v1133, %v1134
    %v1136 = vand.u32 %v1135, 4294901760
    %1137 = vmatmul.mubr.f32.gmra.mrb[0].mxu0 %v1136
    %v1138 = vpop.f32.mrb[0].mxu0
    %v1139 = vadd.f32 0.0, %v1138
    %v1140 = vpop.f32.mrb[0].mxu0
    %1141 = vmatprep.mubr.f32.mxu0 0.0
    %v1142 = vand.u32 %v1044, 4294901760
    %v1143 = vsub.f32 %v1044, %v1142
    %v1144 = vand.u32 %v1143, 4294901760
    %v1145 = vsub.f32 %v1143, %v1144
    %v1146 = vand.u32 %v1145, 4294901760
    %1147 = vmatmul.mubr.f32.gmra.mrb[0].mxu0 %v1146
    %v1148 = vpop.f32.mrb[0].mxu0
    %v1149 = vadd.f32 0.0, %v1148
    %v1150 = vpop.f32.mrb[0].mxu0
    %1151 = vdwg.mxu0
    %1152 = vmatprep.subr.mxu0 0.0
    %v1153 = vand.u32 %v1033, 4294901760
    %v1154 = vsub.f32 %v1033, %v1153
    %v1155 = vand.u32 %v1154, 4294901760
    %v1156 = vsub.f32 %v1154, %v1155
    %v1157 = vand.u32 %v1156, 4294901760
    %1158 = vmatpush1.msra.mxu0 %v1157
    %1159 = vmatprep.subr.mxu0 0.0
    %1160 = vmatpush1.msra.mxu0 0.0
    %1161 = vmatprep.subr.mxu0 0.0
    %1162 = vmatpush1.msra.mxu0 0.0
    %1163 = vmatprep.subr.mxu0 0.0
    %1164 = vmatpush1.msra.mxu0 0.0
    %1165 = vmatprep.subr.mxu0 0.0
    %1166 = vmatpush1.msra.mxu0 0.0
    %1167 = vmatprep.subr.mxu0 0.0
    %1168 = vmatpush1.msra.mxu0 0.0
    %1169 = vmatprep.subr.mxu0 0.0
    %1170 = vmatpush1.msra.mxu0 0.0
    %1171 = vmatprep.subr.mxu0 0.0
    %1172 = vmatpush1.msra.mxu0 0.0
    %1173 = vmatprep.subr.mxu0 0.0
    %1174 = vmatpush1.msra.mxu0 0.0
    %1175 = vmatprep.subr.mxu0 0.0
    %1176 = vmatpush1.msra.mxu0 0.0
    %1177 = vmatprep.subr.mxu0 0.0
    %1178 = vmatpush1.msra.mxu0 0.0
    %1179 = vmatprep.subr.mxu0 0.0
    %1180 = vmatpush1.msra.mxu0 0.0
    %1181 = vmatprep.subr.mxu0 0.0
    %1182 = vmatpush1.msra.mxu0 0.0
    %1183 = vmatprep.subr.mxu0 0.0
    %1184 = vmatpush1.msra.mxu0 0.0
    %1185 = vmatprep.subr.mxu0 0.0
    %1186 = vmatpush1.msra.mxu0 0.0
    %1187 = vmatprep.subr.mxu0 0.0
    %1188 = vmatpush1.msra.mxu0 0.0
    %1189 = vmatprep.subr.mxu0 0.0
    %1190 = vmatpush1.msra.mxu0 0.0
    %1191 = vmatprep.subr.mxu0 0.0
    %1192 = vmatpush1.msra.mxu0 0.0
    %1193 = vmatprep.subr.mxu0 0.0
    %1194 = vmatpush1.msra.mxu0 0.0
    %1195 = vmatprep.subr.mxu0 0.0
    %1196 = vmatpush1.msra.mxu0 0.0
    %1197 = vmatprep.subr.mxu0 0.0
    %1198 = vmatpush1.msra.mxu0 0.0
    %1199 = vmatprep.subr.mxu0 0.0
    %1200 = vmatpush1.msra.mxu0 0.0
    %1201 = vmatprep.subr.mxu0 0.0
    %1202 = vmatpush1.msra.mxu0 0.0
    %1203 = vmatprep.subr.mxu0 0.0
    %1204 = vmatpush1.msra.mxu0 0.0
    %1205 = vmatprep.subr.mxu0 0.0
    %1206 = vmatpush1.msra.mxu0 0.0
    %1207 = vmatprep.subr.mxu0 0.0
    %1208 = vmatpush1.msra.mxu0 0.0
    %1209 = vmatprep.subr.mxu0 0.0
    %1210 = vmatpush1.msra.mxu0 0.0
    %1211 = vmatprep.subr.mxu0 0.0
    %1212 = vmatpush1.msra.mxu0 0.0
    %1213 = vmatprep.subr.mxu0 0.0
    %1214 = vmatpush1.msra.mxu0 0.0
    %1215 = vmatprep.subr.mxu0 0.0
    %1216 = vmatpush1.msra.mxu0 0.0
    %1217 = vmatprep.subr.mxu0 0.0
    %1218 = vmatpush1.msra.mxu0 0.0
    %1219 = vmatprep.subr.mxu0 0.0
    %1220 = vmatpush1.msra.mxu0 0.0
    %1221 = vmatprep.mubr.f32.mxu0 0.0
    %v1222 = vand.u32 %v1035, 4294901760
    %1223 = vmatmul.mubr.f32.gmra.mrb[0].mxu0 %v1222
    %v1224 = vpop.f32.mrb[0].mxu0
    %v1225 = vadd.f32 %v1119, %v1224
    %v1226 = vpop.f32.mrb[0].mxu0
    %1227 = vmatprep.mubr.f32.mxu0 0.0
    %v1228 = vand.u32 %v1038, 4294901760
    %1229 = vmatmul.mubr.f32.gmra.mrb[0].mxu0 %v1228
    %v1230 = vpop.f32.mrb[0].mxu0
    %v1231 = vadd.f32 %v1129, %v1230
    %v1232 = vpop.f32.mrb[0].mxu0
    %1233 = vmatprep.mubr.f32.mxu0 0.0
    %v1234 = vand.u32 %v1041, 4294901760
    %1235 = vmatmul.mubr.f32.gmra.mrb[0].mxu0 %v1234
    %v1236 = vpop.f32.mrb[0].mxu0
    %v1237 = vadd.f32 %v1139, %v1236
    %v1238 = vpop.f32.mrb[0].mxu0
    %1239 = vmatprep.mubr.f32.mxu0 0.0
    %v1240 = vand.u32 %v1044, 4294901760
    %1241 = vmatmul.mubr.f32.gmra.mrb[0].mxu0 %v1240
    %v1242 = vpop.f32.mrb[0].mxu0
    %v1243 = vadd.f32 %v1149, %v1242
    %v1244 = vpop.f32.mrb[0].mxu0
    %1245 = vdwg.mxu0
    %1246 = vmatprep.subr.mxu0 0.0
    %v1247 = vand.u32 %v1033, 4294901760
    %v1248 = vsub.f32 %v1033, %v1247
    %1249 = vmatpush1.msra.mxu0 %v1248
    %1250 = vmatprep.subr.mxu0 0.0
    %1251 = vmatpush1.msra.mxu0 0.0
    %1252 = vmatprep.subr.mxu0 0.0
    %1253 = vmatpush1.msra.mxu0 0.0
    %1254 = vmatprep.subr.mxu0 0.0
    %1255 = vmatpush1.msra.mxu0 0.0
    %1256 = vmatprep.subr.mxu0 0.0
    %1257 = vmatpush1.msra.mxu0 0.0
    %1258 = vmatprep.subr.mxu0 0.0
    %1259 = vmatpush1.msra.mxu0 0.0
    %1260 = vmatprep.subr.mxu0 0.0
    %1261 = vmatpush1.msra.mxu0 0.0
    %1262 = vmatprep.subr.mxu0 0.0
    %1263 = vmatpush1.msra.mxu0 0.0
    %1264 = vmatprep.subr.mxu0 0.0
    %1265 = vmatpush1.msra.mxu0 0.0
    %1266 = vmatprep.subr.mxu0 0.0
    %1267 = vmatpush1.msra.mxu0 0.0
    %1268 = vmatprep.subr.mxu0 0.0
    %1269 = vmatpush1.msra.mxu0 0.0
    %1270 = vmatprep.subr.mxu0 0.0
    %1271 = vmatpush1.msra.mxu0 0.0
    %1272 = vmatprep.subr.mxu0 0.0
    %1273 = vmatpush1.msra.mxu0 0.0
    %1274 = vmatprep.subr.mxu0 0.0
    %1275 = vmatpush1.msra.mxu0 0.0
    %1276 = vmatprep.subr.mxu0 0.0
    %1277 = vmatpush1.msra.mxu0 0.0
    %1278 = vmatprep.subr.mxu0 0.0
    %1279 = vmatpush1.msra.mxu0 0.0
    %1280 = vmatprep.subr.mxu0 0.0
    %1281 = vmatpush1.msra.mxu0 0.0
    %1282 = vmatprep.subr.mxu0 0.0
    %1283 = vmatpush1.msra.mxu0 0.0
    %1284 = vmatprep.subr.mxu0 0.0
    %1285 = vmatpush1.msra.mxu0 0.0
    %1286 = vmatprep.subr.mxu0 0.0
    %1287 = vmatpush1.msra.mxu0 0.0
    %1288 = vmatprep.subr.mxu0 0.0
    %1289 = vmatpush1.msra.mxu0 0.0
    %1290 = vmatprep.subr.mxu0 0.0
    %1291 = vmatpush1.msra.mxu0 0.0
    %1292 = vmatprep.subr.mxu0 0.0
    %1293 = vmatpush1.msra.mxu0 0.0
    %1294 = vmatprep.subr.mxu0 0.0
    %1295 = vmatpush1.msra.mxu0 0.0
    %1296 = vmatprep.subr.mxu0 0.0
    %1297 = vmatpush1.msra.mxu0 0.0
    %1298 = vmatprep.subr.mxu0 0.0
    %1299 = vmatpush1.msra.mxu0 0.0
    %1300 = vmatprep.subr.mxu0 0.0
    %1301 = vmatpush1.msra.mxu0 0.0
    %1302 = vmatprep.subr.mxu0 0.0
    %1303 = vmatpush1.msra.mxu0 0.0
    %1304 = vmatprep.subr.mxu0 0.0
    %1305 = vmatpush1.msra.mxu0 0.0
    %1306 = vmatprep.subr.mxu0 0.0
    %1307 = vmatpush1.msra.mxu0 0.0
    %1308 = vmatprep.subr.mxu0 0.0
    %1309 = vmatpush1.msra.mxu0 0.0
    %1310 = vmatprep.subr.mxu0 0.0
    %1311 = vmatpush1.msra.mxu0 0.0
    %1312 = vmatprep.mubr.f32.mxu0 0.0
    %v1313 = vand.u32 %v1035, 4294901760
    %v1314 = vsub.f32 %v1035, %v1313
    %1315 = vmatmul.mubr.f32.gmra.mrb[0].mxu0 %v1314
    %v1316 = vpop.f32.mrb[0].mxu0
    %v1317 = vadd.f32 %v1225, %v1316
    %v1318 = vpop.f32.mrb[0].mxu0
    %1319 = vmatprep.mubr.f32.mxu0 0.0
    %v1320 = vand.u32 %v1038, 4294901760
    %v1321 = vsub.f32 %v1038, %v1320
    %1322 = vmatmul.mubr.f32.gmra.mrb[0].mxu0 %v1321
    %v1323 = vpop.f32.mrb[0].mxu0
    %v1324 = vadd.f32 %v1231, %v1323
    %v1325 = vpop.f32.mrb[0].mxu0
    %1326 = vmatprep.mubr.f32.mxu0 0.0
    %v1327 = vand.u32 %v1041, 4294901760
    %v1328 = vsub.f32 %v1041, %v1327
    %1329 = vmatmul.mubr.f32.gmra.mrb[0].mxu0 %v1328
    %v1330 = vpop.f32.mrb[0].mxu0
    %v1331 = vadd.f32 %v1237, %v1330
    %v1332 = vpop.f32.mrb[0].mxu0
    %1333 = vmatprep.mubr.f32.mxu0 0.0
    %v1334 = vand.u32 %v1044, 4294901760
    %v1335 = vsub.f32 %v1044, %v1334
    %1336 = vmatmul.mubr.f32.gmra.mrb[0].mxu0 %v1335
    %v1337 = vpop.f32.mrb[0].mxu0
    %v1338 = vadd.f32 %v1243, %v1337
    %v1339 = vpop.f32.mrb[0].mxu0
    %1340 = vdwg.mxu0
    %1341 = vmatprep.subr.mxu0 0.0
    %v1342 = vand.u32 %v1033, 4294901760
    %1343 = vmatpush1.msra.mxu0 %v1342
    %1344 = vmatprep.subr.mxu0 0.0
    %1345 = vmatpush1.msra.mxu0 0.0
    %1346 = vmatprep.subr.mxu0 0.0
    %1347 = vmatpush1.msra.mxu0 0.0
    %1348 = vmatprep.subr.mxu0 0.0
    %1349 = vmatpush1.msra.mxu0 0.0
    %1350 = vmatprep.subr.mxu0 0.0
    %1351 = vmatpush1.msra.mxu0 0.0
    %1352 = vmatprep.subr.mxu0 0.0
    %1353 = vmatpush1.msra.mxu0 0.0
    %1354 = vmatprep.subr.mxu0 0.0
    %1355 = vmatpush1.msra.mxu0 0.0
    %1356 = vmatprep.subr.mxu0 0.0
    %1357 = vmatpush1.msra.mxu0 0.0
    %1358 = vmatprep.subr.mxu0 0.0
    %1359 = vmatpush1.msra.mxu0 0.0
    %1360 = vmatprep.subr.mxu0 0.0
    %1361 = vmatpush1.msra.mxu0 0.0
    %1362 = vmatprep.subr.mxu0 0.0
    %1363 = vmatpush1.msra.mxu0 0.0
    %1364 = vmatprep.subr.mxu0 0.0
    %1365 = vmatpush1.msra.mxu0 0.0
    %1366 = vmatprep.subr.mxu0 0.0
    %1367 = vmatpush1.msra.mxu0 0.0
    %1368 = vmatprep.subr.mxu0 0.0
    %1369 = vmatpush1.msra.mxu0 0.0
    %1370 = vmatprep.subr.mxu0 0.0
    %1371 = vmatpush1.msra.mxu0 0.0
    %1372 = vmatprep.subr.mxu0 0.0
    %1373 = vmatpush1.msra.mxu0 0.0
    %1374 = vmatprep.subr.mxu0 0.0
    %1375 = vmatpush1.msra.mxu0 0.0
    %1376 = vmatprep.subr.mxu0 0.0
    %1377 = vmatpush1.msra.mxu0 0.0
    %1378 = vmatprep.subr.mxu0 0.0
    %1379 = vmatpush1.msra.mxu0 0.0
    %1380 = vmatprep.subr.mxu0 0.0
    %1381 = vmatpush1.msra.mxu0 0.0
    %1382 = vmatprep.subr.mxu0 0.0
    %1383 = vmatpush1.msra.mxu0 0.0
    %1384 = vmatprep.subr.mxu0 0.0
    %1385 = vmatpush1.msra.mxu0 0.0
    %1386 = vmatprep.subr.mxu0 0.0
    %1387 = vmatpush1.msra.mxu0 0.0
    %1388 = vmatprep.subr.mxu0 0.0
    %1389 = vmatpush1.msra.mxu0 0.0
    %1390 = vmatprep.subr.mxu0 0.0
    %1391 = vmatpush1.msra.mxu0 0.0
    %1392 = vmatprep.subr.mxu0 0.0
    %1393 = vmatpush1.msra.mxu0 0.0
    %1394 = vmatprep.subr.mxu0 0.0
    %1395 = vmatpush1.msra.mxu0 0.0
    %1396 = vmatprep.subr.mxu0 0.0
    %1397 = vmatpush1.msra.mxu0 0.0
    %1398 = vmatprep.subr.mxu0 0.0
    %1399 = vmatpush1.msra.mxu0 0.0
    %1400 = vmatprep.subr.mxu0 0.0
    %1401 = vmatpush1.msra.mxu0 0.0
    %1402 = vmatprep.subr.mxu0 0.0
    %1403 = vmatpush1.msra.mxu0 0.0
    %1404 = vmatprep.subr.mxu0 0.0
    %1405 = vmatpush1.msra.mxu0 0.0
    %1406 = vmatprep.mubr.f32.mxu0 0.0
    %v1407 = vand.u32 %v1035, 4294901760
    %v1408 = vsub.f32 %v1035, %v1407
    %v1409 = vand.u32 %v1408, 4294901760
    %1410 = vmatmul.mubr.f32.gmra.mrb[0].mxu0 %v1409
    %v1411 = vpop.f32.mrb[0].mxu0
    %v1412 = vadd.f32 %v1317, %v1411
    %v1413 = vpop.f32.mrb[0].mxu0
    %1414 = vmatprep.mubr.f32.mxu0 0.0
    %v1415 = vand.u32 %v1038, 4294901760
    %v1416 = vsub.f32 %v1038, %v1415
    %v1417 = vand.u32 %v1416, 4294901760
    %1418 = vmatmul.mubr.f32.gmra.mrb[0].mxu0 %v1417
    %v1419 = vpop.f32.mrb[0].mxu0
    %v1420 = vadd.f32 %v1324, %v1419
    %v1421 = vpop.f32.mrb[0].mxu0
    %1422 = vmatprep.mubr.f32.mxu0 0.0
    %v1423 = vand.u32 %v1041, 4294901760
    %v1424 = vsub.f32 %v1041, %v1423
    %v1425 = vand.u32 %v1424, 4294901760
    %1426 = vmatmul.mubr.f32.gmra.mrb[0].mxu0 %v1425
    %v1427 = vpop.f32.mrb[0].mxu0
    %v1428 = vadd.f32 %v1331, %v1427
    %v1429 = vpop.f32.mrb[0].mxu0
    %1430 = vmatprep.mubr.f32.mxu0 0.0
    %v1431 = vand.u32 %v1044, 4294901760
    %v1432 = vsub.f32 %v1044, %v1431
    %v1433 = vand.u32 %v1432, 4294901760
    %1434 = vmatmul.mubr.f32.gmra.mrb[0].mxu0 %v1433
    %v1435 = vpop.f32.mrb[0].mxu0
    %v1436 = vadd.f32 %v1338, %v1435
    %v1437 = vpop.f32.mrb[0].mxu0
    %1438 = vdwg.mxu0
    %1439 = vmatprep.subr.mxu0 0.0
    %v1440 = vand.u32 %v1033, 4294901760
    %v1441 = vsub.f32 %v1033, %v1440
    %v1442 = vand.u32 %v1441, 4294901760
    %1443 = vmatpush1.msra.mxu0 %v1442
    %1444 = vmatprep.subr.mxu0 0.0
    %1445 = vmatpush1.msra.mxu0 0.0
    %1446 = vmatprep.subr.mxu0 0.0
    %1447 = vmatpush1.msra.mxu0 0.0
    %1448 = vmatprep.subr.mxu0 0.0
    %1449 = vmatpush1.msra.mxu0 0.0
    %1450 = vmatprep.subr.mxu0 0.0
    %1451 = vmatpush1.msra.mxu0 0.0
    %1452 = vmatprep.subr.mxu0 0.0
    %1453 = vmatpush1.msra.mxu0 0.0
    %1454 = vmatprep.subr.mxu0 0.0
    %1455 = vmatpush1.msra.mxu0 0.0
    %1456 = vmatprep.subr.mxu0 0.0
    %1457 = vmatpush1.msra.mxu0 0.0
    %1458 = vmatprep.subr.mxu0 0.0
    %1459 = vmatpush1.msra.mxu0 0.0
    %1460 = vmatprep.subr.mxu0 0.0
    %1461 = vmatpush1.msra.mxu0 0.0
    %1462 = vmatprep.subr.mxu0 0.0
    %1463 = vmatpush1.msra.mxu0 0.0
    %1464 = vmatprep.subr.mxu0 0.0
    %1465 = vmatpush1.msra.mxu0 0.0
    %1466 = vmatprep.subr.mxu0 0.0
    %1467 = vmatpush1.msra.mxu0 0.0
    %1468 = vmatprep.subr.mxu0 0.0
    %1469 = vmatpush1.msra.mxu0 0.0
    %1470 = vmatprep.subr.mxu0 0.0
    %1471 = vmatpush1.msra.mxu0 0.0
    %1472 = vmatprep.subr.mxu0 0.0
    %1473 = vmatpush1.msra.mxu0 0.0
    %1474 = vmatprep.subr.mxu0 0.0
    %1475 = vmatpush1.msra.mxu0 0.0
    %1476 = vmatprep.subr.mxu0 0.0
    %1477 = vmatpush1.msra.mxu0 0.0
    %1478 = vmatprep.subr.mxu0 0.0
    %1479 = vmatpush1.msra.mxu0 0.0
    %1480 = vmatprep.subr.mxu0 0.0
    %1481 = vmatpush1.msra.mxu0 0.0
    %1482 = vmatprep.subr.mxu0 0.0
    %1483 = vmatpush1.msra.mxu0 0.0
    %1484 = vmatprep.subr.mxu0 0.0
    %1485 = vmatpush1.msra.mxu0 0.0
    %1486 = vmatprep.subr.mxu0 0.0
    %1487 = vmatpush1.msra.mxu0 0.0
    %1488 = vmatprep.subr.mxu0 0.0
    %1489 = vmatpush1.msra.mxu0 0.0
    %1490 = vmatprep.subr.mxu0 0.0
    %1491 = vmatpush1.msra.mxu0 0.0
    %1492 = vmatprep.subr.mxu0 0.0
    %1493 = vmatpush1.msra.mxu0 0.0
    %1494 = vmatprep.subr.mxu0 0.0
    %1495 = vmatpush1.msra.mxu0 0.0
    %1496 = vmatprep.subr.mxu0 0.0
    %1497 = vmatpush1.msra.mxu0 0.0
    %1498 = vmatprep.subr.mxu0 0.0
    %1499 = vmatpush1.msra.mxu0 0.0
    %1500 = vmatprep.subr.mxu0 0.0
    %1501 = vmatpush1.msra.mxu0 0.0
    %1502 = vmatprep.subr.mxu0 0.0
    %1503 = vmatpush1.msra.mxu0 0.0
    %1504 = vmatprep.subr.mxu0 0.0
    %1505 = vmatpush1.msra.mxu0 0.0
    %1506 = vmatprep.mubr.f32.mxu0 0.0
    %v1507 = vand.u32 %v1035, 4294901760
    %1508 = vmatmul.mubr.f32.gmra.mrb[0].mxu0 %v1507
    %v1509 = vpop.f32.mrb[0].mxu0
    %v1510 = vadd.f32 %v1412, %v1509
    %v1511 = vpop.f32.mrb[0].mxu0
    %1512 = vmatprep.mubr.f32.mxu0 0.0
    %v1513 = vand.u32 %v1038, 4294901760
    %1514 = vmatmul.mubr.f32.gmra.mrb[0].mxu0 %v1513
    %v1515 = vpop.f32.mrb[0].mxu0
    %v1516 = vadd.f32 %v1420, %v1515
    %v1517 = vpop.f32.mrb[0].mxu0
    %1518 = vmatprep.mubr.f32.mxu0 0.0
    %v1519 = vand.u32 %v1041, 4294901760
    %1520 = vmatmul.mubr.f32.gmra.mrb[0].mxu0 %v1519
    %v1521 = vpop.f32.mrb[0].mxu0
    %v1522 = vadd.f32 %v1428, %v1521
    %v1523 = vpop.f32.mrb[0].mxu0
    %1524 = vmatprep.mubr.f32.mxu0 0.0
    %v1525 = vand.u32 %v1044, 4294901760
    %1526 = vmatmul.mubr.f32.gmra.mrb[0].mxu0 %v1525
    %v1527 = vpop.f32.mrb[0].mxu0
    %v1528 = vadd.f32 %v1436, %v1527
    %v1529 = vpop.f32.mrb[0].mxu0
    %1530 = vdwg.mxu0
    %1531 = vmatprep.subr.mxu0 0.0
    %v1532 = vand.u32 %v1033, 4294901760
    %1533 = vmatpush1.msra.mxu0 %v1532
    %1534 = vmatprep.subr.mxu0 0.0
    %1535 = vmatpush1.msra.mxu0 0.0
    %1536 = vmatprep.subr.mxu0 0.0
    %1537 = vmatpush1.msra.mxu0 0.0
    %1538 = vmatprep.subr.mxu0 0.0
    %1539 = vmatpush1.msra.mxu0 0.0
    %1540 = vmatprep.subr.mxu0 0.0
    %1541 = vmatpush1.msra.mxu0 0.0
    %1542 = vmatprep.subr.mxu0 0.0
    %1543 = vmatpush1.msra.mxu0 0.0
    %1544 = vmatprep.subr.mxu0 0.0
    %1545 = vmatpush1.msra.mxu0 0.0
    %1546 = vmatprep.subr.mxu0 0.0
    %1547 = vmatpush1.msra.mxu0 0.0
    %1548 = vmatprep.subr.mxu0 0.0
    %1549 = vmatpush1.msra.mxu0 0.0
    %1550 = vmatprep.subr.mxu0 0.0
    %1551 = vmatpush1.msra.mxu0 0.0
    %1552 = vmatprep.subr.mxu0 0.0
    %1553 = vmatpush1.msra.mxu0 0.0
    %1554 = vmatprep.subr.mxu0 0.0
    %1555 = vmatpush1.msra.mxu0 0.0
    %1556 = vmatprep.subr.mxu0 0.0
    %1557 = vmatpush1.msra.mxu0 0.0
    %1558 = vmatprep.subr.mxu0 0.0
    %1559 = vmatpush1.msra.mxu0 0.0
    %1560 = vmatprep.subr.mxu0 0.0
    %1561 = vmatpush1.msra.mxu0 0.0
    %1562 = vmatprep.subr.mxu0 0.0
    %1563 = vmatpush1.msra.mxu0 0.0
    %1564 = vmatprep.subr.mxu0 0.0
    %1565 = vmatpush1.msra.mxu0 0.0
    %1566 = vmatprep.subr.mxu0 0.0
    %1567 = vmatpush1.msra.mxu0 0.0
    %1568 = vmatprep.subr.mxu0 0.0
    %1569 = vmatpush1.msra.mxu0 0.0
    %1570 = vmatprep.subr.mxu0 0.0
    %1571 = vmatpush1.msra.mxu0 0.0
    %1572 = vmatprep.subr.mxu0 0.0
    %1573 = vmatpush1.msra.mxu0 0.0
    %1574 = vmatprep.subr.mxu0 0.0
    %1575 = vmatpush1.msra.mxu0 0.0
    %1576 = vmatprep.subr.mxu0 0.0
    %1577 = vmatpush1.msra.mxu0 0.0
    %1578 = vmatprep.subr.mxu0 0.0
    %1579 = vmatpush1.msra.mxu0 0.0
    %1580 = vmatprep.subr.mxu0 0.0
    %1581 = vmatpush1.msra.mxu0 0.0
    %1582 = vmatprep.subr.mxu0 0.0
    %1583 = vmatpush1.msra.mxu0 0.0
    %1584 = vmatprep.subr.mxu0 0.0
    %1585 = vmatpush1.msra.mxu0 0.0
    %1586 = vmatprep.subr.mxu0 0.0
    %1587 = vmatpush1.msra.mxu0 0.0
    %1588 = vmatprep.subr.mxu0 0.0
    %1589 = vmatpush1.msra.mxu0 0.0
    %1590 = vmatprep.subr.mxu0 0.0
    %1591 = vmatpush1.msra.mxu0 0.0
    %1592 = vmatprep.subr.mxu0 0.0
    %1593 = vmatpush1.msra.mxu0 0.0
    %1594 = vmatprep.subr.mxu0 0.0
    %1595 = vmatpush1.msra.mxu0 0.0
    %1596 = vmatprep.mubr.f32.mxu0 0.0
    %v1597 = vand.u32 %v1035, 4294901760
    %1598 = vmatmul.mubr.f32.gmra.mrb[0].mxu0 %v1597
    %v1599 = vpop.f32.mrb[0].mxu0
    %v1600 = vadd.f32 %v1510, %v1599
    %v1601 = vpop.f32.mrb[0].mxu0
    %1602 = vmatprep.mubr.f32.mxu0 0.0
    %v1603 = vand.u32 %v1038, 4294901760
    %1604 = vmatmul.mubr.f32.gmra.mrb[0].mxu0 %v1603
    %v1605 = vpop.f32.mrb[0].mxu0
    %v1606 = vadd.f32 %v1516, %v1605
    %v1607 = vpop.f32.mrb[0].mxu0
    %1608 = vmatprep.mubr.f32.mxu0 0.0
    %v1609 = vand.u32 %v1041, 4294901760
    %1610 = vmatmul.mubr.f32.gmra.mrb[0].mxu0 %v1609
    %v1611 = vpop.f32.mrb[0].mxu0
    %v1612 = vadd.f32 %v1522, %v1611
    %v1613 = vpop.f32.mrb[0].mxu0
    %1614 = vmatprep.mubr.f32.mxu0 0.0
    %v1615 = vand.u32 %v1044, 4294901760
    %1616 = vmatmul.mubr.f32.gmra.mrb[0].mxu0 %v1615
    %v1617 = vpop.f32.mrb[0].mxu0
    %v1618 = vadd.f32 %v1528, %v1617
    %v1619 = vpop.f32.mrb[0].mxu0
    %1620 = vdwg.mxu0
    %vm1621 = vcmask 31744
    %1622 = vst.msk [vmem:[#allocation3] sm:$0xff] %vm1621, %v1600
    %1623 = vst.msk [vmem:[#allocation3 + $0x8] sm:$0xff] %vm1621, %v1606
    %1624 = vst.msk [vmem:[#allocation3 + $0x10] sm:$0xff] %vm1621, %v1612
    %1625 = vst.msk [vmem:[#allocation3 + $0x18] sm:$0xff] %vm1621, %v1618
    %v1626 = vld [vmem:[#allocation3] ss:$2 sm:$0xff]
    %s1627 = scalar_lea.vmem [#allocation3], 16
    %v1628 = vld [vmem:[%s1627] ss:$2 sm:$0xff]
    %s1629 = scalar_lea.vmem [#allocation3], 1
    %v1630 = vld [vmem:[%s1629] ss:$2 sm:$0xff]
    %s1631 = scalar_lea.vmem [#allocation3], 17
    %v1632 = vld [vmem:[%s1631] ss:$2 sm:$0xff]
    %v1633 = vand.u32 2147483647, %v1626
    %v1634 = vand.u32 2147483647, %v1628
    %v1635 = vand.u32 2147483647, %v1630
    %v1636 = vand.u32 2147483647, %v1632
    %v1637 = vadd.f32 %v1633, %v1635
    %v1638 = vadd.f32 %v1634, %v1636
    %v1639 = vsel %vm1621, %v1637, 0.0
    %v1640 = vsel %vm1621, %v1638, 0.0
    %v1641 = vadd.f32 %v1639, %v1640
    %1642 = vadd.xlane.f32.xlu0 %v1641
    %v1643 = vpop.xlane.xlu0 %1642
    %v1644 = vrot.slane %v1643, 4
    %v1645 = vadd.f32 %v1643, %v1644
    %v1646 = vrot.slane %v1645, 2
    %v1647 = vadd.f32 %v1645, %v1646
    %v1648 = vrot.slane %v1647, 1
    %v1649 = vadd.f32 %v1647, %v1648
    %s1650 = vtos %v1649
    %s1651 = scalar_lea.smem [#allocation11], 2
    %1652 = sst [smem:[%s1651]] %s1650
    %v1653 = vadd.f32 %v1626, %v1630
    %v1654 = vadd.f32 %v1628, %v1632
    %v1655 = vld [vmem:[%s4] sm:$0xf]
    %v1657 = vsel %vm1621, %v1653, 0
    %v1660 = vsel %vm1621, %v1654, 0
    %vm1662 = vcmask 1043456
    %v1664 = vsel %vm1662, %v1655, 0
    %1666 = vmatprep.subr.mxu0 0.0
    %v1667 = vand.u32 %v1664, 4294901760
    %1668 = vmatpush1.msra.mxu0 %v1667
    %1669 = vmatprep.subr.mxu0 0.0
    %1670 = vmatpush1.msra.mxu0 0.0
    %1671 = vmatprep.subr.mxu0 0.0
    %1672 = vmatpush1.msra.mxu0 0.0
    %1673 = vmatprep.subr.mxu0 0.0
    %1674 = vmatpush1.msra.mxu0 0.0
    %1675 = vmatprep.subr.mxu0 0.0
    %1676 = vmatpush1.msra.mxu0 0.0
    %1677 = vmatprep.subr.mxu0 0.0
    %1678 = vmatpush1.msra.mxu0 0.0
    %1679 = vmatprep.subr.mxu0 0.0
    %1680 = vmatpush1.msra.mxu0 0.0
    %1681 = vmatprep.subr.mxu0 0.0
    %1682 = vmatpush1.msra.mxu0 0.0
    %1683 = vmatprep.subr.mxu0 0.0
    %1684 = vmatpush1.msra.mxu0 0.0
    %1685 = vmatprep.subr.mxu0 0.0
    %1686 = vmatpush1.msra.mxu0 0.0
    %1687 = vmatprep.subr.mxu0 0.0
    %1688 = vmatpush1.msra.mxu0 0.0
    %1689 = vmatprep.subr.mxu0 0.0
    %1690 = vmatpush1.msra.mxu0 0.0
    %1691 = vmatprep.subr.mxu0 0.0
    %1692 = vmatpush1.msra.mxu0 0.0
    %1693 = vmatprep.subr.mxu0 0.0
    %1694 = vmatpush1.msra.mxu0 0.0
    %1695 = vmatprep.subr.mxu0 0.0
    %1696 = vmatpush1.msra.mxu0 0.0
    %1697 = vmatprep.subr.mxu0 0.0
    %1698 = vmatpush1.msra.mxu0 0.0
    %1699 = vmatprep.subr.mxu0 0.0
    %1700 = vmatpush1.msra.mxu0 0.0
    %1701 = vmatprep.subr.mxu0 0.0
    %1702 = vmatpush1.msra.mxu0 0.0
    %1703 = vmatprep.subr.mxu0 0.0
    %1704 = vmatpush1.msra.mxu0 0.0
    %1705 = vmatprep.subr.mxu0 0.0
    %1706 = vmatpush1.msra.mxu0 0.0
    %1707 = vmatprep.subr.mxu0 0.0
    %1708 = vmatpush1.msra.mxu0 0.0
    %1709 = vmatprep.subr.mxu0 0.0
    %1710 = vmatpush1.msra.mxu0 0.0
    %1711 = vmatprep.subr.mxu0 0.0
    %1712 = vmatpush1.msra.mxu0 0.0
    %1713 = vmatprep.subr.mxu0 0.0
    %1714 = vmatpush1.msra.mxu0 0.0
    %1715 = vmatprep.subr.mxu0 0.0
    %1716 = vmatpush1.msra.mxu0 0.0
    %1717 = vmatprep.subr.mxu0 0.0
    %1718 = vmatpush1.msra.mxu0 0.0
    %1719 = vmatprep.subr.mxu0 0.0
    %1720 = vmatpush1.msra.mxu0 0.0
    %1721 = vmatprep.subr.mxu0 0.0
    %1722 = vmatpush1.msra.mxu0 0.0
    %1723 = vmatprep.subr.mxu0 0.0
    %1724 = vmatpush1.msra.mxu0 0.0
    %1725 = vmatprep.subr.mxu0 0.0
    %1726 = vmatpush1.msra.mxu0 0.0
    %1727 = vmatprep.subr.mxu0 0.0
    %1728 = vmatpush1.msra.mxu0 0.0
    %1729 = vmatprep.subr.mxu0 0.0
    %1730 = vmatpush1.msra.mxu0 0.0
    %1731 = vmatprep.mubr.f32.mxu0 0.0
    %v1732 = vand.u32 %v1657, 4294901760
    %v1733 = vsub.f32 %v1657, %v1732
    %v1734 = vand.u32 %v1733, 4294901760
    %v1735 = vsub.f32 %v1733, %v1734
    %v1736 = vand.u32 %v1735, 4294901760
    %1737 = vmatmul.mubr.f32.gmra.mrb[0].mxu0 %v1736
    %v1738 = vpop.f32.mrb[0].mxu0
    %v1739 = vadd.f32 0.0, %v1738
    %v1740 = vpop.f32.mrb[0].mxu0
    %1741 = vmatprep.mubr.f32.mxu0 0.0
    %v1742 = vand.u32 %v1660, 4294901760
    %v1743 = vsub.f32 %v1660, %v1742
    %v1744 = vand.u32 %v1743, 4294901760
    %v1745 = vsub.f32 %v1743, %v1744
    %v1746 = vand.u32 %v1745, 4294901760
    %1747 = vmatmul.mubr.f32.gmra.mrb[0].mxu0 %v1746
    %v1748 = vpop.f32.mrb[0].mxu0
    %v1749 = vadd.f32 0.0, %v1748
    %v1750 = vpop.f32.mrb[0].mxu0
    %1751 = vdwg.mxu0
    %1752 = vmatprep.subr.mxu0 0.0
    %v1753 = vand.u32 %v1664, 4294901760
    %v1754 = vsub.f32 %v1664, %v1753
    %v1755 = vand.u32 %v1754, 4294901760
    %v1756 = vsub.f32 %v1754, %v1755
    %v1757 = vand.u32 %v1756, 4294901760
    %1758 = vmatpush1.msra.mxu0 %v1757
    %1759 = vmatprep.subr.mxu0 0.0
    %1760 = vmatpush1.msra.mxu0 0.0
    %1761 = vmatprep.subr.mxu0 0.0
    %1762 = vmatpush1.msra.mxu0 0.0
    %1763 = vmatprep.subr.mxu0 0.0
    %1764 = vmatpush1.msra.mxu0 0.0
    %1765 = vmatprep.subr.mxu0 0.0
    %1766 = vmatpush1.msra.mxu0 0.0
    %1767 = vmatprep.subr.mxu0 0.0
    %1768 = vmatpush1.msra.mxu0 0.0
    %1769 = vmatprep.subr.mxu0 0.0
    %1770 = vmatpush1.msra.mxu0 0.0
    %1771 = vmatprep.subr.mxu0 0.0
    %1772 = vmatpush1.msra.mxu0 0.0
    %1773 = vmatprep.subr.mxu0 0.0
    %1774 = vmatpush1.msra.mxu0 0.0
    %1775 = vmatprep.subr.mxu0 0.0
    %1776 = vmatpush1.msra.mxu0 0.0
    %1777 = vmatprep.subr.mxu0 0.0
    %1778 = vmatpush1.msra.mxu0 0.0
    %1779 = vmatprep.subr.mxu0 0.0
    %1780 = vmatpush1.msra.mxu0 0.0
    %1781 = vmatprep.subr.mxu0 0.0
    %1782 = vmatpush1.msra.mxu0 0.0
    %1783 = vmatprep.subr.mxu0 0.0
    %1784 = vmatpush1.msra.mxu0 0.0
    %1785 = vmatprep.subr.mxu0 0.0
    %1786 = vmatpush1.msra.mxu0 0.0
    %1787 = vmatprep.subr.mxu0 0.0
    %1788 = vmatpush1.msra.mxu0 0.0
    %1789 = vmatprep.subr.mxu0 0.0
    %1790 = vmatpush1.msra.mxu0 0.0
    %1791 = vmatprep.subr.mxu0 0.0
    %1792 = vmatpush1.msra.mxu0 0.0
    %1793 = vmatprep.subr.mxu0 0.0
    %1794 = vmatpush1.msra.mxu0 0.0
    %1795 = vmatprep.subr.mxu0 0.0
    %1796 = vmatpush1.msra.mxu0 0.0
    %1797 = vmatprep.subr.mxu0 0.0
    %1798 = vmatpush1.msra.mxu0 0.0
    %1799 = vmatprep.subr.mxu0 0.0
    %1800 = vmatpush1.msra.mxu0 0.0
    %1801 = vmatprep.subr.mxu0 0.0
    %1802 = vmatpush1.msra.mxu0 0.0
    %1803 = vmatprep.subr.mxu0 0.0
    %1804 = vmatpush1.msra.mxu0 0.0
    %1805 = vmatprep.subr.mxu0 0.0
    %1806 = vmatpush1.msra.mxu0 0.0
    %1807 = vmatprep.subr.mxu0 0.0
    %1808 = vmatpush1.msra.mxu0 0.0
    %1809 = vmatprep.subr.mxu0 0.0
    %1810 = vmatpush1.msra.mxu0 0.0
    %1811 = vmatprep.subr.mxu0 0.0
    %1812 = vmatpush1.msra.mxu0 0.0
    %1813 = vmatprep.subr.mxu0 0.0
    %1814 = vmatpush1.msra.mxu0 0.0
    %1815 = vmatprep.subr.mxu0 0.0
    %1816 = vmatpush1.msra.mxu0 0.0
    %1817 = vmatprep.subr.mxu0 0.0
    %1818 = vmatpush1.msra.mxu0 0.0
    %1819 = vmatprep.subr.mxu0 0.0
    %1820 = vmatpush1.msra.mxu0 0.0
    %1821 = vmatprep.mubr.f32.mxu0 0.0
    %v1822 = vand.u32 %v1657, 4294901760
    %1823 = vmatmul.mubr.f32.gmra.mrb[0].mxu0 %v1822
    %v1824 = vpop.f32.mrb[0].mxu0
    %v1825 = vadd.f32 %v1739, %v1824
    %v1826 = vpop.f32.mrb[0].mxu0
    %1827 = vmatprep.mubr.f32.mxu0 0.0
    %v1828 = vand.u32 %v1660, 4294901760
    %1829 = vmatmul.mubr.f32.gmra.mrb[0].mxu0 %v1828
    %v1830 = vpop.f32.mrb[0].mxu0
    %v1831 = vadd.f32 %v1749, %v1830
    %v1832 = vpop.f32.mrb[0].mxu0
    %1833 = vdwg.mxu0
    %1834 = vmatprep.subr.mxu0 0.0
    %v1835 = vand.u32 %v1664, 4294901760
    %v1836 = vsub.f32 %v1664, %v1835
    %1837 = vmatpush1.msra.mxu0 %v1836
    %1838 = vmatprep.subr.mxu0 0.0
    %1839 = vmatpush1.msra.mxu0 0.0
    %1840 = vmatprep.subr.mxu0 0.0
    %1841 = vmatpush1.msra.mxu0 0.0
    %1842 = vmatprep.subr.mxu0 0.0
    %1843 = vmatpush1.msra.mxu0 0.0
    %1844 = vmatprep.subr.mxu0 0.0
    %1845 = vmatpush1.msra.mxu0 0.0
    %1846 = vmatprep.subr.mxu0 0.0
    %1847 = vmatpush1.msra.mxu0 0.0
    %1848 = vmatprep.subr.mxu0 0.0
    %1849 = vmatpush1.msra.mxu0 0.0
    %1850 = vmatprep.subr.mxu0 0.0
    %1851 = vmatpush1.msra.mxu0 0.0
    %1852 = vmatprep.subr.mxu0 0.0
    %1853 = vmatpush1.msra.mxu0 0.0
    %1854 = vmatprep.subr.mxu0 0.0
    %1855 = vmatpush1.msra.mxu0 0.0
    %1856 = vmatprep.subr.mxu0 0.0
    %1857 = vmatpush1.msra.mxu0 0.0
    %1858 = vmatprep.subr.mxu0 0.0
    %1859 = vmatpush1.msra.mxu0 0.0
    %1860 = vmatprep.subr.mxu0 0.0
    %1861 = vmatpush1.msra.mxu0 0.0
    %1862 = vmatprep.subr.mxu0 0.0
    %1863 = vmatpush1.msra.mxu0 0.0
    %1864 = vmatprep.subr.mxu0 0.0
    %1865 = vmatpush1.msra.mxu0 0.0
    %1866 = vmatprep.subr.mxu0 0.0
    %1867 = vmatpush1.msra.mxu0 0.0
    %1868 = vmatprep.subr.mxu0 0.0
    %1869 = vmatpush1.msra.mxu0 0.0
    %1870 = vmatprep.subr.mxu0 0.0
    %1871 = vmatpush1.msra.mxu0 0.0
    %1872 = vmatprep.subr.mxu0 0.0
    %1873 = vmatpush1.msra.mxu0 0.0
    %1874 = vmatprep.subr.mxu0 0.0
    %1875 = vmatpush1.msra.mxu0 0.0
    %1876 = vmatprep.subr.mxu0 0.0
    %1877 = vmatpush1.msra.mxu0 0.0
    %1878 = vmatprep.subr.mxu0 0.0
    %1879 = vmatpush1.msra.mxu0 0.0
    %1880 = vmatprep.subr.mxu0 0.0
    %1881 = vmatpush1.msra.mxu0 0.0
    %1882 = vmatprep.subr.mxu0 0.0
    %1883 = vmatpush1.msra.mxu0 0.0
    %1884 = vmatprep.subr.mxu0 0.0
    %1885 = vmatpush1.msra.mxu0 0.0
    %1886 = vmatprep.subr.mxu0 0.0
    %1887 = vmatpush1.msra.mxu0 0.0
    %1888 = vmatprep.subr.mxu0 0.0
    %1889 = vmatpush1.msra.mxu0 0.0
    %1890 = vmatprep.subr.mxu0 0.0
    %1891 = vmatpush1.msra.mxu0 0.0
    %1892 = vmatprep.subr.mxu0 0.0
    %1893 = vmatpush1.msra.mxu0 0.0
    %1894 = vmatprep.subr.mxu0 0.0
    %1895 = vmatpush1.msra.mxu0 0.0
    %1896 = vmatprep.subr.mxu0 0.0
    %1897 = vmatpush1.msra.mxu0 0.0
    %1898 = vmatprep.subr.mxu0 0.0
    %1899 = vmatpush1.msra.mxu0 0.0
    %1900 = vmatprep.mubr.f32.mxu0 0.0
    %v1901 = vand.u32 %v1657, 4294901760
    %v1902 = vsub.f32 %v1657, %v1901
    %1903 = vmatmul.mubr.f32.gmra.mrb[0].mxu0 %v1902
    %v1904 = vpop.f32.mrb[0].mxu0
    %v1905 = vadd.f32 %v1825, %v1904
    %v1906 = vpop.f32.mrb[0].mxu0
    %1907 = vmatprep.mubr.f32.mxu0 0.0
    %v1908 = vand.u32 %v1660, 4294901760
    %v1909 = vsub.f32 %v1660, %v1908
    %1910 = vmatmul.mubr.f32.gmra.mrb[0].mxu0 %v1909
    %v1911 = vpop.f32.mrb[0].mxu0
    %v1912 = vadd.f32 %v1831, %v1911
    %v1913 = vpop.f32.mrb[0].mxu0
    %1914 = vdwg.mxu0
    %1915 = vmatprep.subr.mxu0 0.0
    %v1916 = vand.u32 %v1664, 4294901760
    %1917 = vmatpush1.msra.mxu0 %v1916
    %1918 = vmatprep.subr.mxu0 0.0
    %1919 = vmatpush1.msra.mxu0 0.0
    %1920 = vmatprep.subr.mxu0 0.0
    %1921 = vmatpush1.msra.mxu0 0.0
    %1922 = vmatprep.subr.mxu0 0.0
    %1923 = vmatpush1.msra.mxu0 0.0
    %1924 = vmatprep.subr.mxu0 0.0
    %1925 = vmatpush1.msra.mxu0 0.0
    %1926 = vmatprep.subr.mxu0 0.0
    %1927 = vmatpush1.msra.mxu0 0.0
    %1928 = vmatprep.subr.mxu0 0.0
    %1929 = vmatpush1.msra.mxu0 0.0
    %1930 = vmatprep.subr.mxu0 0.0
    %1931 = vmatpush1.msra.mxu0 0.0
    %1932 = vmatprep.subr.mxu0 0.0
    %1933 = vmatpush1.msra.mxu0 0.0
    %1934 = vmatprep.subr.mxu0 0.0
    %1935 = vmatpush1.msra.mxu0 0.0
    %1936 = vmatprep.subr.mxu0 0.0
    %1937 = vmatpush1.msra.mxu0 0.0
    %1938 = vmatprep.subr.mxu0 0.0
    %1939 = vmatpush1.msra.mxu0 0.0
    %1940 = vmatprep.subr.mxu0 0.0
    %1941 = vmatpush1.msra.mxu0 0.0
    %1942 = vmatprep.subr.mxu0 0.0
    %1943 = vmatpush1.msra.mxu0 0.0
    %1944 = vmatprep.subr.mxu0 0.0
    %1945 = vmatpush1.msra.mxu0 0.0
    %1946 = vmatprep.subr.mxu0 0.0
    %1947 = vmatpush1.msra.mxu0 0.0
    %1948 = vmatprep.subr.mxu0 0.0
    %1949 = vmatpush1.msra.mxu0 0.0
    %1950 = vmatprep.subr.mxu0 0.0
    %1951 = vmatpush1.msra.mxu0 0.0
    %1952 = vmatprep.subr.mxu0 0.0
    %1953 = vmatpush1.msra.mxu0 0.0
    %1954 = vmatprep.subr.mxu0 0.0
    %1955 = vmatpush1.msra.mxu0 0.0
    %1956 = vmatprep.subr.mxu0 0.0
    %1957 = vmatpush1.msra.mxu0 0.0
    %1958 = vmatprep.subr.mxu0 0.0
    %1959 = vmatpush1.msra.mxu0 0.0
    %1960 = vmatprep.subr.mxu0 0.0
    %1961 = vmatpush1.msra.mxu0 0.0
    %1962 = vmatprep.subr.mxu0 0.0
    %1963 = vmatpush1.msra.mxu0 0.0
    %1964 = vmatprep.subr.mxu0 0.0
    %1965 = vmatpush1.msra.mxu0 0.0
    %1966 = vmatprep.subr.mxu0 0.0
    %1967 = vmatpush1.msra.mxu0 0.0
    %1968 = vmatprep.subr.mxu0 0.0
    %1969 = vmatpush1.msra.mxu0 0.0
    %1970 = vmatprep.subr.mxu0 0.0
    %1971 = vmatpush1.msra.mxu0 0.0
    %1972 = vmatprep.subr.mxu0 0.0
    %1973 = vmatpush1.msra.mxu0 0.0
    %1974 = vmatprep.subr.mxu0 0.0
    %1975 = vmatpush1.msra.mxu0 0.0
    %1976 = vmatprep.subr.mxu0 0.0
    %1977 = vmatpush1.msra.mxu0 0.0
    %1978 = vmatprep.subr.mxu0 0.0
    %1979 = vmatpush1.msra.mxu0 0.0
    %1980 = vmatprep.mubr.f32.mxu0 0.0
    %v1981 = vand.u32 %v1657, 4294901760
    %v1982 = vsub.f32 %v1657, %v1981
    %v1983 = vand.u32 %v1982, 4294901760
    %1984 = vmatmul.mubr.f32.gmra.mrb[0].mxu0 %v1983
    %v1985 = vpop.f32.mrb[0].mxu0
    %v1986 = vadd.f32 %v1905, %v1985
    %v1987 = vpop.f32.mrb[0].mxu0
    %1988 = vmatprep.mubr.f32.mxu0 0.0
    %v1989 = vand.u32 %v1660, 4294901760
    %v1990 = vsub.f32 %v1660, %v1989
    %v1991 = vand.u32 %v1990, 4294901760
    %1992 = vmatmul.mubr.f32.gmra.mrb[0].mxu0 %v1991
    %v1993 = vpop.f32.mrb[0].mxu0
    %v1994 = vadd.f32 %v1912, %v1993
    %v1995 = vpop.f32.mrb[0].mxu0
    %1996 = vdwg.mxu0
    %1997 = vmatprep.subr.mxu0 0.0
    %v1998 = vand.u32 %v1664, 4294901760
    %v1999 = vsub.f32 %v1664, %v1998
    %v2000 = vand.u32 %v1999, 4294901760
    %2001 = vmatpush1.msra.mxu0 %v2000
    %2002 = vmatprep.subr.mxu0 0.0
    %2003 = vmatpush1.msra.mxu0 0.0
    %2004 = vmatprep.subr.mxu0 0.0
    %2005 = vmatpush1.msra.mxu0 0.0
    %2006 = vmatprep.subr.mxu0 0.0
    %2007 = vmatpush1.msra.mxu0 0.0
    %2008 = vmatprep.subr.mxu0 0.0
    %2009 = vmatpush1.msra.mxu0 0.0
    %2010 = vmatprep.subr.mxu0 0.0
    %2011 = vmatpush1.msra.mxu0 0.0
    %2012 = vmatprep.subr.mxu0 0.0
    %2013 = vmatpush1.msra.mxu0 0.0
    %2014 = vmatprep.subr.mxu0 0.0
    %2015 = vmatpush1.msra.mxu0 0.0
    %2016 = vmatprep.subr.mxu0 0.0
    %2017 = vmatpush1.msra.mxu0 0.0
    %2018 = vmatprep.subr.mxu0 0.0
    %2019 = vmatpush1.msra.mxu0 0.0
    %2020 = vmatprep.subr.mxu0 0.0
    %2021 = vmatpush1.msra.mxu0 0.0
    %2022 = vmatprep.subr.mxu0 0.0
    %2023 = vmatpush1.msra.mxu0 0.0
    %2024 = vmatprep.subr.mxu0 0.0
    %2025 = vmatpush1.msra.mxu0 0.0
    %2026 = vmatprep.subr.mxu0 0.0
    %2027 = vmatpush1.msra.mxu0 0.0
    %2028 = vmatprep.subr.mxu0 0.0
    %2029 = vmatpush1.msra.mxu0 0.0
    %2030 = vmatprep.subr.mxu0 0.0
    %2031 = vmatpush1.msra.mxu0 0.0
    %2032 = vmatprep.subr.mxu0 0.0
    %2033 = vmatpush1.msra.mxu0 0.0
    %2034 = vmatprep.subr.mxu0 0.0
    %2035 = vmatpush1.msra.mxu0 0.0
    %2036 = vmatprep.subr.mxu0 0.0
    %2037 = vmatpush1.msra.mxu0 0.0
    %2038 = vmatprep.subr.mxu0 0.0
    %2039 = vmatpush1.msra.mxu0 0.0
    %2040 = vmatprep.subr.mxu0 0.0
    %2041 = vmatpush1.msra.mxu0 0.0
    %2042 = vmatprep.subr.mxu0 0.0
    %2043 = vmatpush1.msra.mxu0 0.0
    %2044 = vmatprep.subr.mxu0 0.0
    %2045 = vmatpush1.msra.mxu0 0.0
    %2046 = vmatprep.subr.mxu0 0.0
    %2047 = vmatpush1.msra.mxu0 0.0
    %2048 = vmatprep.subr.mxu0 0.0
    %2049 = vmatpush1.msra.mxu0 0.0
    %2050 = vmatprep.subr.mxu0 0.0
    %2051 = vmatpush1.msra.mxu0 0.0
    %2052 = vmatprep.subr.mxu0 0.0
    %2053 = vmatpush1.msra.mxu0 0.0
    %2054 = vmatprep.subr.mxu0 0.0
    %2055 = vmatpush1.msra.mxu0 0.0
    %2056 = vmatprep.subr.mxu0 0.0
    %2057 = vmatpush1.msra.mxu0 0.0
    %2058 = vmatprep.subr.mxu0 0.0
    %2059 = vmatpush1.msra.mxu0 0.0
    %2060 = vmatprep.subr.mxu0 0.0
    %2061 = vmatpush1.msra.mxu0 0.0
    %2062 = vmatprep.subr.mxu0 0.0
    %2063 = vmatpush1.msra.mxu0 0.0
    %2064 = vmatprep.mubr.f32.mxu0 0.0
    %v2065 = vand.u32 %v1657, 4294901760
    %2066 = vmatmul.mubr.f32.gmra.mrb[0].mxu0 %v2065
    %v2067 = vpop.f32.mrb[0].mxu0
    %v2068 = vadd.f32 %v1986, %v2067
    %v2069 = vpop.f32.mrb[0].mxu0
    %2070 = vmatprep.mubr.f32.mxu0 0.0
    %v2071 = vand.u32 %v1660, 4294901760
    %2072 = vmatmul.mubr.f32.gmra.mrb[0].mxu0 %v2071
    %v2073 = vpop.f32.mrb[0].mxu0
    %v2074 = vadd.f32 %v1994, %v2073
    %v2075 = vpop.f32.mrb[0].mxu0
    %2076 = vdwg.mxu0
    %2077 = vmatprep.subr.mxu0 0.0
    %v2078 = vand.u32 %v1664, 4294901760
    %2079 = vmatpush1.msra.mxu0 %v2078
    %2080 = vmatprep.subr.mxu0 0.0
    %2081 = vmatpush1.msra.mxu0 0.0
    %2082 = vmatprep.subr.mxu0 0.0
    %2083 = vmatpush1.msra.mxu0 0.0
    %2084 = vmatprep.subr.mxu0 0.0
    %2085 = vmatpush1.msra.mxu0 0.0
    %2086 = vmatprep.subr.mxu0 0.0
    %2087 = vmatpush1.msra.mxu0 0.0
    %2088 = vmatprep.subr.mxu0 0.0
    %2089 = vmatpush1.msra.mxu0 0.0
    %2090 = vmatprep.subr.mxu0 0.0
    %2091 = vmatpush1.msra.mxu0 0.0
    %2092 = vmatprep.subr.mxu0 0.0
    %2093 = vmatpush1.msra.mxu0 0.0
    %2094 = vmatprep.subr.mxu0 0.0
    %2095 = vmatpush1.msra.mxu0 0.0
    %2096 = vmatprep.subr.mxu0 0.0
    %2097 = vmatpush1.msra.mxu0 0.0
    %2098 = vmatprep.subr.mxu0 0.0
    %2099 = vmatpush1.msra.mxu0 0.0
    %2100 = vmatprep.subr.mxu0 0.0
    %2101 = vmatpush1.msra.mxu0 0.0
    %2102 = vmatprep.subr.mxu0 0.0
    %2103 = vmatpush1.msra.mxu0 0.0
    %2104 = vmatprep.subr.mxu0 0.0
    %2105 = vmatpush1.msra.mxu0 0.0
    %2106 = vmatprep.subr.mxu0 0.0
    %2107 = vmatpush1.msra.mxu0 0.0
    %2108 = vmatprep.subr.mxu0 0.0
    %2109 = vmatpush1.msra.mxu0 0.0
    %2110 = vmatprep.subr.mxu0 0.0
    %2111 = vmatpush1.msra.mxu0 0.0
    %2112 = vmatprep.subr.mxu0 0.0
    %2113 = vmatpush1.msra.mxu0 0.0
    %2114 = vmatprep.subr.mxu0 0.0
    %2115 = vmatpush1.msra.mxu0 0.0
    %2116 = vmatprep.subr.mxu0 0.0
    %2117 = vmatpush1.msra.mxu0 0.0
    %2118 = vmatprep.subr.mxu0 0.0
    %2119 = vmatpush1.msra.mxu0 0.0
    %2120 = vmatprep.subr.mxu0 0.0
    %2121 = vmatpush1.msra.mxu0 0.0
    %2122 = vmatprep.subr.mxu0 0.0
    %2123 = vmatpush1.msra.mxu0 0.0
    %2124 = vmatprep.subr.mxu0 0.0
    %2125 = vmatpush1.msra.mxu0 0.0
    %2126 = vmatprep.subr.mxu0 0.0
    %2127 = vmatpush1.msra.mxu0 0.0
    %2128 = vmatprep.subr.mxu0 0.0
    %2129 = vmatpush1.msra.mxu0 0.0
    %2130 = vmatprep.subr.mxu0 0.0
    %2131 = vmatpush1.msra.mxu0 0.0
    %2132 = vmatprep.subr.mxu0 0.0
    %2133 = vmatpush1.msra.mxu0 0.0
    %2134 = vmatprep.subr.mxu0 0.0
    %2135 = vmatpush1.msra.mxu0 0.0
    %2136 = vmatprep.subr.mxu0 0.0
    %2137 = vmatpush1.msra.mxu0 0.0
    %2138 = vmatprep.subr.mxu0 0.0
    %2139 = vmatpush1.msra.mxu0 0.0
    %2140 = vmatprep.subr.mxu0 0.0
    %2141 = vmatpush1.msra.mxu0 0.0
    %2142 = vmatprep.mubr.f32.mxu0 0.0
    %v2143 = vand.u32 %v1657, 4294901760
    %2144 = vmatmul.mubr.f32.gmra.mrb[0].mxu0 %v2143
    %v2145 = vpop.f32.mrb[0].mxu0
    %v2146 = vadd.f32 %v2068, %v2145
    %v2147 = vpop.f32.mrb[0].mxu0
    %2148 = vmatprep.mubr.f32.mxu0 0.0
    %v2149 = vand.u32 %v1660, 4294901760
    %2150 = vmatmul.mubr.f32.gmra.mrb[0].mxu0 %v2149
    %v2151 = vpop.f32.mrb[0].mxu0
    %v2152 = vadd.f32 %v2074, %v2151
    %v2153 = vpop.f32.mrb[0].mxu0
    %2154 = vdwg.mxu0
    %vm2155 = vcmask 15360
    %2156 = vst.msk [vmem:[#allocation4] sm:$0xff] %vm2155, %v2146
    %2157 = vst.msk [vmem:[#allocation4 + $0x8] sm:$0xff] %vm2155, %v2152
    %v2158 = vld [vmem:[#allocation4] ss:$2 sm:$0xff]
    %s2159 = scalar_lea.vmem [#allocation4], 1
    %v2160 = vld [vmem:[%s2159] ss:$2 sm:$0xff]
    %v2161 = vand.u32 2147483647, %v2158
    %v2162 = vand.u32 2147483647, %v2160
    %v2163 = vadd.f32 %v2161, %v2162
    %v2164 = vsel %vm2155, %v2163, 0.0
    %2165 = vadd.xlane.f32.xlu0 %v2164
    %v2166 = vpop.xlane.xlu0 %2165
    %v2167 = vrot.slane %v2166, 4
    %v2168 = vadd.f32 %v2166, %v2167
    %v2169 = vrot.slane %v2168, 2
    %v2170 = vadd.f32 %v2168, %v2169
    %v2171 = vrot.slane %v2170, 1
    %v2172 = vadd.f32 %v2170, %v2171
    %s2173 = vtos %v2172
    %s2174 = scalar_lea.smem [#allocation11], 3
    %2175 = sst [smem:[%s2174]] %s2173
    %v2176 = vadd.f32 %v2158, %v2160
    %v2177 = vld [vmem:[%s5] sm:$0x3]
    %v2179 = vsel %vm2155, %v2176, 0
    %vm2181 = vcmask 1041408
    %v2183 = vsel %vm2181, %v2177, 0
    %2185 = vmatprep.subr.mxu0 0.0
    %v2186 = vand.u32 %v2183, 4294901760
    %2187 = vmatpush1.msra.mxu0 %v2186
    %2188 = vmatprep.subr.mxu0 0.0
    %2189 = vmatpush1.msra.mxu0 0.0
    %2190 = vmatprep.subr.mxu0 0.0
    %2191 = vmatpush1.msra.mxu0 0.0
    %2192 = vmatprep.subr.mxu0 0.0
    %2193 = vmatpush1.msra.mxu0 0.0
    %2194 = vmatprep.subr.mxu0 0.0
    %2195 = vmatpush1.msra.mxu0 0.0
    %2196 = vmatprep.subr.mxu0 0.0
    %2197 = vmatpush1.msra.mxu0 0.0
    %2198 = vmatprep.subr.mxu0 0.0
    %2199 = vmatpush1.msra.mxu0 0.0
    %2200 = vmatprep.subr.mxu0 0.0
    %2201 = vmatpush1.msra.mxu0 0.0
    %2202 = vmatprep.subr.mxu0 0.0
    %2203 = vmatpush1.msra.mxu0 0.0
    %2204 = vmatprep.subr.mxu0 0.0
    %2205 = vmatpush1.msra.mxu0 0.0
    %2206 = vmatprep.subr.mxu0 0.0
    %2207 = vmatpush1.msra.mxu0 0.0
    %2208 = vmatprep.subr.mxu0 0.0
    %2209 = vmatpush1.msra.mxu0 0.0
    %2210 = vmatprep.subr.mxu0 0.0
    %2211 = vmatpush1.msra.mxu0 0.0
    %2212 = vmatprep.subr.mxu0 0.0
    %2213 = vmatpush1.msra.mxu0 0.0
    %2214 = vmatprep.subr.mxu0 0.0
    %2215 = vmatpush1.msra.mxu0 0.0
    %2216 = vmatprep.subr.mxu0 0.0
    %2217 = vmatpush1.msra.mxu0 0.0
    %2218 = vmatprep.subr.mxu0 0.0
    %2219 = vmatpush1.msra.mxu0 0.0
    %2220 = vmatprep.subr.mxu0 0.0
    %2221 = vmatpush1.msra.mxu0 0.0
    %2222 = vmatprep.subr.mxu0 0.0
    %2223 = vmatpush1.msra.mxu0 0.0
    %2224 = vmatprep.subr.mxu0 0.0
    %2225 = vmatpush1.msra.mxu0 0.0
    %2226 = vmatprep.subr.mxu0 0.0
    %2227 = vmatpush1.msra.mxu0 0.0
    %2228 = vmatprep.subr.mxu0 0.0
    %2229 = vmatpush1.msra.mxu0 0.0
    %2230 = vmatprep.subr.mxu0 0.0
    %2231 = vmatpush1.msra.mxu0 0.0
    %2232 = vmatprep.subr.mxu0 0.0
    %2233 = vmatpush1.msra.mxu0 0.0
    %2234 = vmatprep.subr.mxu0 0.0
    %2235 = vmatpush1.msra.mxu0 0.0
    %2236 = vmatprep.subr.mxu0 0.0
    %2237 = vmatpush1.msra.mxu0 0.0
    %2238 = vmatprep.subr.mxu0 0.0
    %2239 = vmatpush1.msra.mxu0 0.0
    %2240 = vmatprep.subr.mxu0 0.0
    %2241 = vmatpush1.msra.mxu0 0.0
    %2242 = vmatprep.subr.mxu0 0.0
    %2243 = vmatpush1.msra.mxu0 0.0
    %2244 = vmatprep.subr.mxu0 0.0
    %2245 = vmatpush1.msra.mxu0 0.0
    %2246 = vmatprep.subr.mxu0 0.0
    %2247 = vmatpush1.msra.mxu0 0.0
    %2248 = vmatprep.subr.mxu0 0.0
    %2249 = vmatpush1.msra.mxu0 0.0
    %2250 = vmatprep.mubr.f32.mxu0 0.0
    %v2251 = vand.u32 %v2179, 4294901760
    %v2252 = vsub.f32 %v2179, %v2251
    %v2253 = vand.u32 %v2252, 4294901760
    %v2254 = vsub.f32 %v2252, %v2253
    %v2255 = vand.u32 %v2254, 4294901760
    %2256 = vmatmul.mubr.f32.gmra.mrb[0].mxu0 %v2255
    %v2257 = vpop.f32.mrb[0].mxu0
    %v2258 = vadd.f32 0.0, %v2257
    %v2259 = vpop.f32.mrb[0].mxu0
    %2260 = vdwg.mxu0
    %2261 = vmatprep.subr.mxu0 0.0
    %v2262 = vand.u32 %v2183, 4294901760
    %v2263 = vsub.f32 %v2183, %v2262
    %v2264 = vand.u32 %v2263, 4294901760
    %v2265 = vsub.f32 %v2263, %v2264
    %v2266 = vand.u32 %v2265, 4294901760
    %2267 = vmatpush1.msra.mxu0 %v2266
    %2268 = vmatprep.subr.mxu0 0.0
    %2269 = vmatpush1.msra.mxu0 0.0
    %2270 = vmatprep.subr.mxu0 0.0
    %2271 = vmatpush1.msra.mxu0 0.0
    %2272 = vmatprep.subr.mxu0 0.0
    %2273 = vmatpush1.msra.mxu0 0.0
    %2274 = vmatprep.subr.mxu0 0.0
    %2275 = vmatpush1.msra.mxu0 0.0
    %2276 = vmatprep.subr.mxu0 0.0
    %2277 = vmatpush1.msra.mxu0 0.0
    %2278 = vmatprep.subr.mxu0 0.0
    %2279 = vmatpush1.msra.mxu0 0.0
    %2280 = vmatprep.subr.mxu0 0.0
    %2281 = vmatpush1.msra.mxu0 0.0
    %2282 = vmatprep.subr.mxu0 0.0
    %2283 = vmatpush1.msra.mxu0 0.0
    %2284 = vmatprep.subr.mxu0 0.0
    %2285 = vmatpush1.msra.mxu0 0.0
    %2286 = vmatprep.subr.mxu0 0.0
    %2287 = vmatpush1.msra.mxu0 0.0
    %2288 = vmatprep.subr.mxu0 0.0
    %2289 = vmatpush1.msra.mxu0 0.0
    %2290 = vmatprep.subr.mxu0 0.0
    %2291 = vmatpush1.msra.mxu0 0.0
    %2292 = vmatprep.subr.mxu0 0.0
    %2293 = vmatpush1.msra.mxu0 0.0
    %2294 = vmatprep.subr.mxu0 0.0
    %2295 = vmatpush1.msra.mxu0 0.0
    %2296 = vmatprep.subr.mxu0 0.0
    %2297 = vmatpush1.msra.mxu0 0.0
    %2298 = vmatprep.subr.mxu0 0.0
    %2299 = vmatpush1.msra.mxu0 0.0
    %2300 = vmatprep.subr.mxu0 0.0
    %2301 = vmatpush1.msra.mxu0 0.0
    %2302 = vmatprep.subr.mxu0 0.0
    %2303 = vmatpush1.msra.mxu0 0.0
    %2304 = vmatprep.subr.mxu0 0.0
    %2305 = vmatpush1.msra.mxu0 0.0
    %2306 = vmatprep.subr.mxu0 0.0
    %2307 = vmatpush1.msra.mxu0 0.0
    %2308 = vmatprep.subr.mxu0 0.0
    %2309 = vmatpush1.msra.mxu0 0.0
    %2310 = vmatprep.subr.mxu0 0.0
    %2311 = vmatpush1.msra.mxu0 0.0
    %2312 = vmatprep.subr.mxu0 0.0
    %2313 = vmatpush1.msra.mxu0 0.0
    %2314 = vmatprep.subr.mxu0 0.0
    %2315 = vmatpush1.msra.mxu0 0.0
    %2316 = vmatprep.subr.mxu0 0.0
    %2317 = vmatpush1.msra.mxu0 0.0
    %2318 = vmatprep.subr.mxu0 0.0
    %2319 = vmatpush1.msra.mxu0 0.0
    %2320 = vmatprep.subr.mxu0 0.0
    %2321 = vmatpush1.msra.mxu0 0.0
    %2322 = vmatprep.subr.mxu0 0.0
    %2323 = vmatpush1.msra.mxu0 0.0
    %2324 = vmatprep.subr.mxu0 0.0
    %2325 = vmatpush1.msra.mxu0 0.0
    %2326 = vmatprep.subr.mxu0 0.0
    %2327 = vmatpush1.msra.mxu0 0.0
    %2328 = vmatprep.subr.mxu0 0.0
    %2329 = vmatpush1.msra.mxu0 0.0
    %2330 = vmatprep.mubr.f32.mxu0 0.0
    %v2331 = vand.u32 %v2179, 4294901760
    %2332 = vmatmul.mubr.f32.gmra.mrb[0].mxu0 %v2331
    %v2333 = vpop.f32.mrb[0].mxu0
    %v2334 = vadd.f32 %v2258, %v2333
    %v2335 = vpop.f32.mrb[0].mxu0
    %2336 = vdwg.mxu0
    %2337 = vmatprep.subr.mxu0 0.0
    %v2338 = vand.u32 %v2183, 4294901760
    %v2339 = vsub.f32 %v2183, %v2338
    %2340 = vmatpush1.msra.mxu0 %v2339
    %2341 = vmatprep.subr.mxu0 0.0
    %2342 = vmatpush1.msra.mxu0 0.0
    %2343 = vmatprep.subr.mxu0 0.0
    %2344 = vmatpush1.msra.mxu0 0.0
    %2345 = vmatprep.subr.mxu0 0.0
    %2346 = vmatpush1.msra.mxu0 0.0
    %2347 = vmatprep.subr.mxu0 0.0
    %2348 = vmatpush1.msra.mxu0 0.0
    %2349 = vmatprep.subr.mxu0 0.0
    %2350 = vmatpush1.msra.mxu0 0.0
    %2351 = vmatprep.subr.mxu0 0.0
    %2352 = vmatpush1.msra.mxu0 0.0
    %2353 = vmatprep.subr.mxu0 0.0
    %2354 = vmatpush1.msra.mxu0 0.0
    %2355 = vmatprep.subr.mxu0 0.0
    %2356 = vmatpush1.msra.mxu0 0.0
    %2357 = vmatprep.subr.mxu0 0.0
    %2358 = vmatpush1.msra.mxu0 0.0
    %2359 = vmatprep.subr.mxu0 0.0
    %2360 = vmatpush1.msra.mxu0 0.0
    %2361 = vmatprep.subr.mxu0 0.0
    %2362 = vmatpush1.msra.mxu0 0.0
    %2363 = vmatprep.subr.mxu0 0.0
    %2364 = vmatpush1.msra.mxu0 0.0
    %2365 = vmatprep.subr.mxu0 0.0
    %2366 = vmatpush1.msra.mxu0 0.0
    %2367 = vmatprep.subr.mxu0 0.0
    %2368 = vmatpush1.msra.mxu0 0.0
    %2369 = vmatprep.subr.mxu0 0.0
    %2370 = vmatpush1.msra.mxu0 0.0
    %2371 = vmatprep.subr.mxu0 0.0
    %2372 = vmatpush1.msra.mxu0 0.0
    %2373 = vmatprep.subr.mxu0 0.0
    %2374 = vmatpush1.msra.mxu0 0.0
    %2375 = vmatprep.subr.mxu0 0.0
    %2376 = vmatpush1.msra.mxu0 0.0
    %2377 = vmatprep.subr.mxu0 0.0
    %2378 = vmatpush1.msra.mxu0 0.0
    %2379 = vmatprep.subr.mxu0 0.0
    %2380 = vmatpush1.msra.mxu0 0.0
    %2381 = vmatprep.subr.mxu0 0.0
    %2382 = vmatpush1.msra.mxu0 0.0
    %2383 = vmatprep.subr.mxu0 0.0
    %2384 = vmatpush1.msra.mxu0 0.0
    %2385 = vmatprep.subr.mxu0 0.0
    %2386 = vmatpush1.msra.mxu0 0.0
    %2387 = vmatprep.subr.mxu0 0.0
    %2388 = vmatpush1.msra.mxu0 0.0
    %2389 = vmatprep.subr.mxu0 0.0
    %2390 = vmatpush1.msra.mxu0 0.0
    %2391 = vmatprep.subr.mxu0 0.0
    %2392 = vmatpush1.msra.mxu0 0.0
    %2393 = vmatprep.subr.mxu0 0.0
    %2394 = vmatpush1.msra.mxu0 0.0
    %2395 = vmatprep.subr.mxu0 0.0
    %2396 = vmatpush1.msra.mxu0 0.0
    %2397 = vmatprep.subr.mxu0 0.0
    %2398 = vmatpush1.msra.mxu0 0.0
    %2399 = vmatprep.subr.mxu0 0.0
    %2400 = vmatpush1.msra.mxu0 0.0
    %2401 = vmatprep.subr.mxu0 0.0
    %2402 = vmatpush1.msra.mxu0 0.0
    %2403 = vmatprep.mubr.f32.mxu0 0.0
    %v2404 = vand.u32 %v2179, 4294901760
    %v2405 = vsub.f32 %v2179, %v2404
    %2406 = vmatmul.mubr.f32.gmra.mrb[0].mxu0 %v2405
    %v2407 = vpop.f32.mrb[0].mxu0
    %v2408 = vadd.f32 %v2334, %v2407
    %v2409 = vpop.f32.mrb[0].mxu0
    %2410 = vdwg.mxu0
    %2411 = vmatprep.subr.mxu0 0.0
    %v2412 = vand.u32 %v2183, 4294901760
    %2413 = vmatpush1.msra.mxu0 %v2412
    %2414 = vmatprep.subr.mxu0 0.0
    %2415 = vmatpush1.msra.mxu0 0.0
    %2416 = vmatprep.subr.mxu0 0.0
    %2417 = vmatpush1.msra.mxu0 0.0
    %2418 = vmatprep.subr.mxu0 0.0
    %2419 = vmatpush1.msra.mxu0 0.0
    %2420 = vmatprep.subr.mxu0 0.0
    %2421 = vmatpush1.msra.mxu0 0.0
    %2422 = vmatprep.subr.mxu0 0.0
    %2423 = vmatpush1.msra.mxu0 0.0
    %2424 = vmatprep.subr.mxu0 0.0
    %2425 = vmatpush1.msra.mxu0 0.0
    %2426 = vmatprep.subr.mxu0 0.0
    %2427 = vmatpush1.msra.mxu0 0.0
    %2428 = vmatprep.subr.mxu0 0.0
    %2429 = vmatpush1.msra.mxu0 0.0
    %2430 = vmatprep.subr.mxu0 0.0
    %2431 = vmatpush1.msra.mxu0 0.0
    %2432 = vmatprep.subr.mxu0 0.0
    %2433 = vmatpush1.msra.mxu0 0.0
    %2434 = vmatprep.subr.mxu0 0.0
    %2435 = vmatpush1.msra.mxu0 0.0
    %2436 = vmatprep.subr.mxu0 0.0
    %2437 = vmatpush1.msra.mxu0 0.0
    %2438 = vmatprep.subr.mxu0 0.0
    %2439 = vmatpush1.msra.mxu0 0.0
    %2440 = vmatprep.subr.mxu0 0.0
    %2441 = vmatpush1.msra.mxu0 0.0
    %2442 = vmatprep.subr.mxu0 0.0
    %2443 = vmatpush1.msra.mxu0 0.0
    %2444 = vmatprep.subr.mxu0 0.0
    %2445 = vmatpush1.msra.mxu0 0.0
    %2446 = vmatprep.subr.mxu0 0.0
    %2447 = vmatpush1.msra.mxu0 0.0
    %2448 = vmatprep.subr.mxu0 0.0
    %2449 = vmatpush1.msra.mxu0 0.0
    %2450 = vmatprep.subr.mxu0 0.0
    %2451 = vmatpush1.msra.mxu0 0.0
    %2452 = vmatprep.subr.mxu0 0.0
    %2453 = vmatpush1.msra.mxu0 0.0
    %2454 = vmatprep.subr.mxu0 0.0
    %2455 = vmatpush1.msra.mxu0 0.0
    %2456 = vmatprep.subr.mxu0 0.0
    %2457 = vmatpush1.msra.mxu0 0.0
    %2458 = vmatprep.subr.mxu0 0.0
    %2459 = vmatpush1.msra.mxu0 0.0
    %2460 = vmatprep.subr.mxu0 0.0
    %2461 = vmatpush1.msra.mxu0 0.0
    %2462 = vmatprep.subr.mxu0 0.0
    %2463 = vmatpush1.msra.mxu0 0.0
    %2464 = vmatprep.subr.mxu0 0.0
    %2465 = vmatpush1.msra.mxu0 0.0
    %2466 = vmatprep.subr.mxu0 0.0
    %2467 = vmatpush1.msra.mxu0 0.0
    %2468 = vmatprep.subr.mxu0 0.0
    %2469 = vmatpush1.msra.mxu0 0.0
    %2470 = vmatprep.subr.mxu0 0.0
    %2471 = vmatpush1.msra.mxu0 0.0
    %2472 = vmatprep.subr.mxu0 0.0
    %2473 = vmatpush1.msra.mxu0 0.0
    %2474 = vmatprep.subr.mxu0 0.0
    %2475 = vmatpush1.msra.mxu0 0.0
    %2476 = vmatprep.mubr.f32.mxu0 0.0
    %v2477 = vand.u32 %v2179, 4294901760
    %v2478 = vsub.f32 %v2179, %v2477
    %v2479 = vand.u32 %v2478, 4294901760
    %2480 = vmatmul.mubr.f32.gmra.mrb[0].mxu0 %v2479
    %v2481 = vpop.f32.mrb[0].mxu0
    %v2482 = vadd.f32 %v2408, %v2481
    %v2483 = vpop.f32.mrb[0].mxu0
    %2484 = vdwg.mxu0
    %2485 = vmatprep.subr.mxu0 0.0
    %v2486 = vand.u32 %v2183, 4294901760
    %v2487 = vsub.f32 %v2183, %v2486
    %v2488 = vand.u32 %v2487, 4294901760
    %2489 = vmatpush1.msra.mxu0 %v2488
    %2490 = vmatprep.subr.mxu0 0.0
    %2491 = vmatpush1.msra.mxu0 0.0
    %2492 = vmatprep.subr.mxu0 0.0
    %2493 = vmatpush1.msra.mxu0 0.0
    %2494 = vmatprep.subr.mxu0 0.0
    %2495 = vmatpush1.msra.mxu0 0.0
    %2496 = vmatprep.subr.mxu0 0.0
    %2497 = vmatpush1.msra.mxu0 0.0
    %2498 = vmatprep.subr.mxu0 0.0
    %2499 = vmatpush1.msra.mxu0 0.0
    %2500 = vmatprep.subr.mxu0 0.0
    %2501 = vmatpush1.msra.mxu0 0.0
    %2502 = vmatprep.subr.mxu0 0.0
    %2503 = vmatpush1.msra.mxu0 0.0
    %2504 = vmatprep.subr.mxu0 0.0
    %2505 = vmatpush1.msra.mxu0 0.0
    %2506 = vmatprep.subr.mxu0 0.0
    %2507 = vmatpush1.msra.mxu0 0.0
    %2508 = vmatprep.subr.mxu0 0.0
    %2509 = vmatpush1.msra.mxu0 0.0
    %2510 = vmatprep.subr.mxu0 0.0
    %2511 = vmatpush1.msra.mxu0 0.0
    %2512 = vmatprep.subr.mxu0 0.0
    %2513 = vmatpush1.msra.mxu0 0.0
    %2514 = vmatprep.subr.mxu0 0.0
    %2515 = vmatpush1.msra.mxu0 0.0
    %2516 = vmatprep.subr.mxu0 0.0
    %2517 = vmatpush1.msra.mxu0 0.0
    %2518 = vmatprep.subr.mxu0 0.0
    %2519 = vmatpush1.msra.mxu0 0.0
    %2520 = vmatprep.subr.mxu0 0.0
    %2521 = vmatpush1.msra.mxu0 0.0
    %2522 = vmatprep.subr.mxu0 0.0
    %2523 = vmatpush1.msra.mxu0 0.0
    %2524 = vmatprep.subr.mxu0 0.0
    %2525 = vmatpush1.msra.mxu0 0.0
    %2526 = vmatprep.subr.mxu0 0.0
    %2527 = vmatpush1.msra.mxu0 0.0
    %2528 = vmatprep.subr.mxu0 0.0
    %2529 = vmatpush1.msra.mxu0 0.0
    %2530 = vmatprep.subr.mxu0 0.0
    %2531 = vmatpush1.msra.mxu0 0.0
    %2532 = vmatprep.subr.mxu0 0.0
    %2533 = vmatpush1.msra.mxu0 0.0
    %2534 = vmatprep.subr.mxu0 0.0
    %2535 = vmatpush1.msra.mxu0 0.0
    %2536 = vmatprep.subr.mxu0 0.0
    %2537 = vmatpush1.msra.mxu0 0.0
    %2538 = vmatprep.subr.mxu0 0.0
    %2539 = vmatpush1.msra.mxu0 0.0
    %2540 = vmatprep.subr.mxu0 0.0
    %2541 = vmatpush1.msra.mxu0 0.0
    %2542 = vmatprep.subr.mxu0 0.0
    %2543 = vmatpush1.msra.mxu0 0.0
    %2544 = vmatprep.subr.mxu0 0.0
    %2545 = vmatpush1.msra.mxu0 0.0
    %2546 = vmatprep.subr.mxu0 0.0
    %2547 = vmatpush1.msra.mxu0 0.0
    %2548 = vmatprep.subr.mxu0 0.0
    %2549 = vmatpush1.msra.mxu0 0.0
    %2550 = vmatprep.subr.mxu0 0.0
    %2551 = vmatpush1.msra.mxu0 0.0
    %2552 = vmatprep.mubr.f32.mxu0 0.0
    %v2553 = vand.u32 %v2179, 4294901760
    %2554 = vmatmul.mubr.f32.gmra.mrb[0].mxu0 %v2553
    %v2555 = vpop.f32.mrb[0].mxu0
    %v2556 = vadd.f32 %v2482, %v2555
    %v2557 = vpop.f32.mrb[0].mxu0
    %2558 = vdwg.mxu0
    %2559 = vmatprep.subr.mxu0 0.0
    %v2560 = vand.u32 %v2183, 4294901760
    %2561 = vmatpush1.msra.mxu0 %v2560
    %2562 = vmatprep.subr.mxu0 0.0
    %2563 = vmatpush1.msra.mxu0 0.0
    %2564 = vmatprep.subr.mxu0 0.0
    %2565 = vmatpush1.msra.mxu0 0.0
    %2566 = vmatprep.subr.mxu0 0.0
    %2567 = vmatpush1.msra.mxu0 0.0
    %2568 = vmatprep.subr.mxu0 0.0
    %2569 = vmatpush1.msra.mxu0 0.0
    %2570 = vmatprep.subr.mxu0 0.0
    %2571 = vmatpush1.msra.mxu0 0.0
    %2572 = vmatprep.subr.mxu0 0.0
    %2573 = vmatpush1.msra.mxu0 0.0
    %2574 = vmatprep.subr.mxu0 0.0
    %2575 = vmatpush1.msra.mxu0 0.0
    %2576 = vmatprep.subr.mxu0 0.0
    %2577 = vmatpush1.msra.mxu0 0.0
    %2578 = vmatprep.subr.mxu0 0.0
    %2579 = vmatpush1.msra.mxu0 0.0
    %2580 = vmatprep.subr.mxu0 0.0
    %2581 = vmatpush1.msra.mxu0 0.0
    %2582 = vmatprep.subr.mxu0 0.0
    %2583 = vmatpush1.msra.mxu0 0.0
    %2584 = vmatprep.subr.mxu0 0.0
    %2585 = vmatpush1.msra.mxu0 0.0
    %2586 = vmatprep.subr.mxu0 0.0
    %2587 = vmatpush1.msra.mxu0 0.0
    %2588 = vmatprep.subr.mxu0 0.0
    %2589 = vmatpush1.msra.mxu0 0.0
    %2590 = vmatprep.subr.mxu0 0.0
    %2591 = vmatpush1.msra.mxu0 0.0
    %2592 = vmatprep.subr.mxu0 0.0
    %2593 = vmatpush1.msra.mxu0 0.0
    %2594 = vmatprep.subr.mxu0 0.0
    %2595 = vmatpush1.msra.mxu0 0.0
    %2596 = vmatprep.subr.mxu0 0.0
    %2597 = vmatpush1.msra.mxu0 0.0
    %2598 = vmatprep.subr.mxu0 0.0
    %2599 = vmatpush1.msra.mxu0 0.0
    %2600 = vmatprep.subr.mxu0 0.0
    %2601 = vmatpush1.msra.mxu0 0.0
    %2602 = vmatprep.subr.mxu0 0.0
    %2603 = vmatpush1.msra.mxu0 0.0
    %2604 = vmatprep.subr.mxu0 0.0
    %2605 = vmatpush1.msra.mxu0 0.0
    %2606 = vmatprep.subr.mxu0 0.0
    %2607 = vmatpush1.msra.mxu0 0.0
    %2608 = vmatprep.subr.mxu0 0.0
    %2609 = vmatpush1.msra.mxu0 0.0
    %2610 = vmatprep.subr.mxu0 0.0
    %2611 = vmatpush1.msra.mxu0 0.0
    %2612 = vmatprep.subr.mxu0 0.0
    %2613 = vmatpush1.msra.mxu0 0.0
    %2614 = vmatprep.subr.mxu0 0.0
    %2615 = vmatpush1.msra.mxu0 0.0
    %2616 = vmatprep.subr.mxu0 0.0
    %2617 = vmatpush1.msra.mxu0 0.0
    %2618 = vmatprep.subr.mxu0 0.0
    %2619 = vmatpush1.msra.mxu0 0.0
    %2620 = vmatprep.subr.mxu0 0.0
    %2621 = vmatpush1.msra.mxu0 0.0
    %2622 = vmatprep.subr.mxu0 0.0
    %2623 = vmatpush1.msra.mxu0 0.0
    %2624 = vmatprep.mubr.f32.mxu0 0.0
    %v2625 = vand.u32 %v2179, 4294901760
    %2626 = vmatmul.mubr.f32.gmra.mrb[0].mxu0 %v2625
    %v2627 = vpop.f32.mrb[0].mxu0
    %v2628 = vadd.f32 %v2556, %v2627
    %v2629 = vpop.f32.mrb[0].mxu0
    %2630 = vdwg.mxu0
    %vm2631 = vcmask 7168
    %2632 = vst.msk [vmem:[#allocation5] sm:$0xff] %vm2631, %v2628
    %v2633 = vld [vmem:[#allocation5] sm:$0xff]
    %v2634 = vand.u32 2147483647, %v2633
    %v2635 = vsel %vm2631, %v2634, 0.0
    %2636 = vadd.xlane.f32.xlu0 %v2635
    %v2637 = vpop.xlane.xlu0 %2636
    %v2638 = vrot.slane %v2637, 4
    %v2639 = vadd.f32 %v2637, %v2638
    %v2640 = vrot.slane %v2639, 2
    %v2641 = vadd.f32 %v2639, %v2640
    %v2642 = vrot.slane %v2641, 1
    %v2643 = vadd.f32 %v2641, %v2642
    %s2644 = vtos %v2643
    %s2645 = scalar_lea.smem [#allocation11], 4
    %2646 = sst [smem:[%s2645]] %s2644
    // Predicated region
    $region34: #{multiscale_l1_loss.1} parent=1 // pred_check
      _
    $region35: #{multiscale_l1_loss.1} parent=1 // pred_check_branch
      %2648 = sbr.rel (0) target = $region37
    $region36: #{multiscale_l1_loss.1} parent=1 // pred_region
      %s2650 = ssub.s32 16, 16
      %2651 = vsyncadd [#allocation8], %s2650
      %s2653 = sshll.u32 %s6, 4
      %s2654 = int_to_ptr.vmem [resolvable:$true] %s2653
      %2656 = dma.smem_to_vmem [#allocation11], 16, %s2654, [#allocation8]
    $region37: #{multiscale_l1_loss.1} parent=1 // pred_fallthru
      _
    // Predicated region
    $region38: #{multiscale_l1_loss.1} parent=1 // pred_check
      _
    $region39: #{multiscale_l1_loss.1} parent=1 // pred_check_branch
      %2658 = sbr.rel (0) target = $region41
    $region40: #{multiscale_l1_loss.1} parent=1 // pred_region
      %2659 = dma.done [#allocation8], 16
    $region41: #{multiscale_l1_loss.1} parent=1 // pred_fallthru
      _
    %2660 = sfence
    %2661 = vsyncpa [#allocation7], 1
    %2662 = vsyncpa [#allocation10], 1
    %2663 = vsyncpa [#allocation8], 1

</llo_original>
